<compile_context>
chip_gen: v5e
topology: v5e:2x2
jax: 0.10.0
libtpu: 0.0.40
codegen_flags: <defaults>
</compile_context>

<pallas_src>
import numpy as np

import jax
import jax.numpy as jnp
from jax.experimental import pallas as pl
from jax.experimental.pallas import tpu as pltpu


def _round_up(x, m):
    return (x + m - 1) // m * m


def _make_kernel(heads, dim_head, dim_true, eps, use_approx_recip):
    inner = heads * dim_head
    inv_dim = 1.0 / dim_true

    def kernel(x_ref, c_ref, bias_ref, nullrow_ref,
               wq_ref, wkv_ref, wout_ref, g_ref, gout_ref,
               o_ref, kv_sc, o_sc):
        f32 = jnp.float32
        mm_dtype = wq_ref.dtype

        # ---- K/V for this batch element: ONE fused (Mc, cdim_pad) @ (cdim_pad, 2*inner)
        #      matmul, cached in VMEM scratch; null token written as KV row 0. The
        #      query-tile axis is sequential ("arbitrary"), so this runs once per batch. ----
        @pl.when(pl.program_id(1) == 0)
        def _():
            kv = jnp.dot(c_ref[0], wkv_ref[...],
                         preferred_element_type=f32)              # (Mc, 2*inner)
            kv_sc[...] = kv.astype(mm_dtype)
            kv_sc[0:1, :] = nullrow_ref[...].astype(mm_dtype)     # null k/v row

        # ---- LayerNorm(x) in f32 over the TRUE feature columns (padded cols are 0) ----
        x = x_ref[0].astype(f32)                                  # (TN, dim_pad)
        dim_pad = x.shape[-1]
        colmask = (jax.lax.broadcasted_iota(jnp.int32, (1, dim_pad), 1)
                   < dim_true).astype(f32)
        mu = jnp.sum(x, axis=-1, keepdims=True) * inv_dim
        xm = (x - mu) * colmask
        var = jnp.sum(xm * xm, axis=-1, keepdims=True) * inv_dim
        xn = xm * jax.lax.rsqrt(var + eps) * g_ref[...].astype(f32)
        xn_c = xn.astype(mm_dtype)

        # ---- fused Q projection for all heads (attention scale folded into Wq) ----
        q_all = jnp.dot(xn_c, wq_ref[...],
                        preferred_element_type=f32).astype(mm_dtype)   # (TN, inner)

        bias = bias_ref[...]                                      # (1, Mc) f32 KV mask

        # ---- per-head attention; each o_h lands in the (TN, inner) output slab ----
        for h in range(heads):                                    # static unroll
            lo = h * dim_head
            q_h = q_all[:, lo:lo + dim_head]                      # (TN, D)
            k_h = kv_sc[:, lo:lo + dim_head]                      # (Mc, D)
            v_h = kv_sc[:, inner + lo:inner + lo + dim_head]      # (Mc, D)
            # q @ k^T via dot_general contracting the last axes (no transpose op)
            sim = jax.lax.dot_general(
                q_h, k_h, dimension_numbers=(((1,), (1,)), ((), ())),
                preferred_element_type=f32)                       # (TN, Mc)
            sim = sim + bias                                      # kill padded KV slots
            # softmax in f32 (matches torch softmax(dtype=float32))
            sim = sim - jnp.max(sim, axis=-1, keepdims=True)
            p = jnp.exp(sim)
            inv = pl.reciprocal(jnp.sum(p, axis=-1, keepdims=True),
                                approx=use_approx_recip)          # EUP on fast path
            o_h = jnp.dot(p.astype(mm_dtype), v_h,
                          preferred_element_type=f32) * inv       # (TN, D)
            o_sc[:, lo:lo + dim_head] = o_h.astype(mm_dtype)

        # ---- fused output projection: ONE (TN, inner) @ (inner, dim_pad) matmul ----
        out = jnp.dot(o_sc[...], wout_ref[...],
                      preferred_element_type=f32)                 # (TN, dim_pad)

        # ---- output LayerNorm (to_out[1]) in f32 over true columns ----
        mu2 = jnp.sum(out, axis=-1, keepdims=True) * inv_dim
        om = (out - mu2) * colmask
        var2 = jnp.sum(om * om, axis=-1, keepdims=True) * inv_dim
        out = om * jax.lax.rsqrt(var2 + eps) * gout_ref[...].astype(f32)
        o_ref[0] = out.astype(o_ref.dtype)

    return kernel


def cross_attention(x, context, params, *, heads, dim_head, mask=None,
                    tile_n=512, matmul_dtype=jnp.bfloat16, eps=1e-5):
    """Pallas forward of imagen CrossAttention (norm_context=False, cosine_sim_attn=False)."""
    assert mask is None  # TODO(synk): boolean mask path not implemented
    b, n, dim = x.shape
    _, m, cdim = context.shape
    inner = heads * dim_head
    scale = dim_head ** -0.5  # cosine_sim_attn=False; cosine_sim_scale == 1

    # --- query-axis tiling (bounds VMEM independent of N, enables pipelining) ---
    tile_n = _round_up(min(tile_n, _round_up(n, 8)), 8)
    n_pad = _round_up(n, tile_n)
    # --- feature axis padded to a lane-dense multiple of 128 (unmasked output stores) ---
    dim_pad = _round_up(dim, 128)
    x_p = jnp.zeros((b, n_pad, dim_pad), x.dtype).at[:, :n, :dim].set(x)

    # --- KV axis: row 0 reserved for the null token, length padded to multiple of 128;
    #     padded slots are killed with a -1e30 additive bias. ---
    mc = _round_up(m + 1, 128)
    cdim_pad = _round_up(cdim, 128)
    ctx_p = jnp.zeros((b, mc, cdim_pad), matmul_dtype)
    ctx_p = ctx_p.at[:, 1:1 + m, :cdim].set(context.astype(matmul_dtype))
    bias = jnp.where(jnp.arange(mc) < m + 1, 0.0, -1e30).reshape(1, mc).astype(jnp.float32)

    # --- fused weight slabs (scale folded into Wq; zero-padded to padded dims) ---
    wq = params["wq"].astype(jnp.float32)      # (inner, dim)      nn.Linear: (out, in)
    wkv = params["wkv"].astype(jnp.float32)    # (2*inner, cdim)
    wout = params["wout"].astype(jnp.float32)  # (dim, inner)
    nk = params["null_kv"][0].astype(jnp.float32)   # (dim_head,)
    nv = params["null_kv"][1].astype(jnp.float32)

    wq_slab = jnp.zeros((dim_pad, inner), jnp.float32).at[:dim, :].set((wq * scale).T)
    wkv_slab = jnp.zeros((cdim_pad, 2 * inner), jnp.float32).at[:cdim, :].set(wkv.T)
    wout_slab = jnp.zeros((inner, dim_pad), jnp.float32).at[:, :dim].set(wout.T)
    # null k/v replicated per head, laid out exactly like one row of the fused KV matmul
    nullrow = jnp.concatenate([jnp.tile(nk, heads), jnp.tile(nv, heads)]).reshape(1, 2 * inner)

    wq_slab = wq_slab.astype(matmul_dtype)
    wkv_slab = wkv_slab.astype(matmul_dtype)
    wout_slab = wout_slab.astype(matmul_dtype)

    g = jnp.zeros((1, dim_pad), jnp.float32).at[0, :dim].set(params["g"].astype(jnp.float32))
    gout = jnp.zeros((1, dim_pad), jnp.float32).at[0, :dim].set(params["g_out"].astype(jnp.float32))

    use_approx = np.dtype(matmul_dtype) != np.dtype(np.float32)
    kernel = _make_kernel(heads, dim_head, dim, eps, use_approx)

    def const_spec(shape):
        zeros = (0,) * len(shape)
        return pl.BlockSpec(shape, lambda bi, ni, _z=zeros: _z)

    # Advisory cost estimate for XLA scheduling around the custom call.
    flops = 2 * b * (n_pad * dim_pad * inner            # Q projection
                     + mc * cdim_pad * 2 * inner        # K/V projection (per batch)
                     + 2 * heads * n_pad * mc * dim_head  # sim + P@V
                     + n_pad * inner * dim_pad)         # output projection
    bytes_accessed = int(x_p.size * x_p.dtype.itemsize
                         + ctx_p.size * np.dtype(matmul_dtype).itemsize
                         + (wq_slab.size + wkv_slab.size + wout_slab.size)
                         * np.dtype(matmul_dtype).itemsize
                         + b * n_pad * dim_pad * x.dtype.itemsize)
    cost = pl.CostEstimate(flops=int(flops),
                           transcendentals=int(b * heads * n_pad * mc),
                           bytes_accessed=bytes_accessed)

    out = pl.pallas_call(
        kernel,
        out_shape=jax.ShapeDtypeStruct((b, n_pad, dim_pad), x.dtype),
        grid_spec=pltpu.PrefetchScalarGridSpec(
            num_scalar_prefetch=0,
            grid=(b, n_pad // tile_n),
            in_specs=[
                pl.BlockSpec((1, tile_n, dim_pad), lambda bi, ni: (bi, ni, 0)),   # x
                pl.BlockSpec((1, mc, cdim_pad), lambda bi, ni: (bi, 0, 0)),       # context
                const_spec(bias.shape),
                const_spec(nullrow.shape),
                const_spec(wq_slab.shape),
                const_spec(wkv_slab.shape),
                const_spec(wout_slab.shape),
                const_spec(g.shape),
                const_spec(gout.shape),
            ],
            out_specs=pl.BlockSpec((1, tile_n, dim_pad), lambda bi, ni: (bi, ni, 0)),
            scratch_shapes=[
                pltpu.VMEM((mc, 2 * inner), matmul_dtype),    # fused K|V cache
                pltpu.VMEM((tile_n, inner), matmul_dtype),    # per-head outputs slab
            ],
        ),
        compiler_params=pltpu.CompilerParams(
            dimension_semantics=("parallel", "arbitrary"),
            vmem_limit_bytes=48 * 1024 * 1024,
        ),
        cost_estimate=cost,
    )(x_p, ctx_p, bias, nullrow, wq_slab, wkv_slab, wout_slab, g, gout)

    return out[:, :n, :dim]


def cross_attention_ref(x, context, params, *, heads, dim_head):
    """Pure-JAX reference mirroring the PyTorch forward, for correctness check."""
    def ln(t, g, eps=1e-5):
        mu = t.mean(-1, keepdims=True)
        var = ((t - mu) ** 2).mean(-1, keepdims=True)
        return (t - mu) * jax.lax.rsqrt(var + eps) * g

    b, n, dim = x.shape
    inner = heads * dim_head
    scale = dim_head ** -0.5
    xn = ln(x, params["g"])
    q = xn @ params["wq"].T
    kv = context @ params["wkv"].T
    k, v = kv[..., :inner], kv[..., inner:]

    def split(t):
        return t.reshape(b, -1, heads, dim_head).transpose(0, 2, 1, 3)

    q, k, v = split(q), split(k), split(v)
    nk = jnp.broadcast_to(params["null_kv"][0], (b, heads, 1, dim_head))
    nv = jnp.broadcast_to(params["null_kv"][1], (b, heads, 1, dim_head))
    k = jnp.concatenate([nk, k], axis=-2)
    v = jnp.concatenate([nv, v], axis=-2)
    sim = jnp.einsum("bhid,bhjd->bhij", q * scale, k)
    attn = jax.nn.softmax(sim.astype(jnp.float32), axis=-1)
    out = jnp.einsum("bhij,bhjd->bhid", attn, v)
    out = out.transpose(0, 2, 1, 3).reshape(b, n, inner)
    out = out @ params["wout"].T
    return ln(out, params["g_out"])


if __name__ == "__main__":
    B, N, M = 2, 16, 8
    DIM = 32
    HEADS = 4
    DIM_HEAD = 16
    INNER = HEADS * DIM_HEAD
    COND_DIM = DIM  # default(conditional_dim, dim)

    key = jax.random.PRNGKey(0)
    ks = jax.random.split(key, 8)
    x = jax.random.normal(ks[0], (B, N, DIM), dtype=jnp.float32)
    context = jax.random.normal(ks[1], (B, M, COND_DIM), dtype=jnp.float32)

    params = {
        "g": jnp.ones((DIM,), jnp.float32),
        "g_out": jnp.ones((DIM,), jnp.float32),
        "null_kv": jax.random.normal(ks[2], (2, DIM_HEAD), dtype=jnp.float32),
        # nn.Linear weights are (out_features, in_features)
        "wq": jax.random.normal(ks[3], (INNER, DIM), dtype=jnp.float32) * 0.1,
        "wkv": jax.random.normal(ks[4], (2 * INNER, COND_DIM), dtype=jnp.float32) * 0.1,
        "wout": jax.random.normal(ks[5], (DIM, INNER), dtype=jnp.float32) * 0.1,
    }

    ref = cross_attention_ref(x, context, params, heads=HEADS, dim_head=DIM_HEAD)

    # Strict check: f32 matmul operands, exact softmax normalization.
    out_f32 = jax.block_until_ready(
        cross_attention(x, context, params, heads=HEADS, dim_head=DIM_HEAD,
                        matmul_dtype=jnp.float32))
    assert out_f32.shape == (B, N, DIM)
    assert jnp.allclose(out_f32, ref, atol=2e-3, rtol=2e-3), "f32 path mismatch vs reference"

    # Fast path: bf16 MXU operands with f32 accumulation + approx reciprocal
    # (looser tolerance for bf16 operand rounding — intentional).
    out_bf16 = jax.block_until_ready(
        cross_attention(x, context, params, heads=HEADS, dim_head=DIM_HEAD,
                        matmul_dtype=jnp.bfloat16))
    assert out_bf16.shape == (B, N, DIM)
    assert jnp.allclose(out_bf16, ref, atol=1e-1, rtol=1e-1), "bf16 path mismatch vs reference"

    print("KERNEL_OK")
</pallas_src>

<mosaic_0001>
module attributes {stable_mosaic.version = 11 : i64} {
  func.func @kernel(%arg0: i32, %arg1: i32, %arg2: memref<1x16x128xf32, #tpu.memory_space<vmem>>, %arg3: memref<1x128x128xf32, #tpu.memory_space<vmem>>, %arg4: memref<1x128xf32, #tpu.memory_space<vmem>>, %arg5: memref<1x128xf32, #tpu.memory_space<vmem>>, %arg6: memref<128x64xf32, #tpu.memory_space<vmem>>, %arg7: memref<128x128xf32, #tpu.memory_space<vmem>>, %arg8: memref<64x128xf32, #tpu.memory_space<vmem>>, %arg9: memref<1x128xf32, #tpu.memory_space<vmem>>, %arg10: memref<1x128xf32, #tpu.memory_space<vmem>>, %arg11: memref<1x16x128xf32, #tpu.memory_space<vmem>>, %arg12: memref<128x128xf32, #tpu.memory_space<vmem>>, %arg13: memref<16x64xf32, #tpu.memory_space<vmem>>) attributes {dimension_semantics = [#tpu.dimension_semantics<parallel>, #tpu.dimension_semantics<arbitrary>], iteration_bounds = array<i64: 2, 1>, scalar_prefetch = 0 : i64, scratch_operands = 2 : i64, tpu.core_type = #tpu.core_type<tc>, window_params = [{transform_indices = @transform_0, window_bounds = array<i64: 1, 16, 128>}, {transform_indices = @transform_1, window_bounds = array<i64: 1, 128, 128>}, {pipeline_mode = #tpu.pipeline_mode<synchronous>, transform_indices = @transform_2, window_bounds = array<i64: 1, 128>}, {pipeline_mode = #tpu.pipeline_mode<synchronous>, transform_indices = @transform_3, window_bounds = array<i64: 1, 128>}, {pipeline_mode = #tpu.pipeline_mode<synchronous>, transform_indices = @transform_4, window_bounds = array<i64: 128, 64>}, {pipeline_mode = #tpu.pipeline_mode<synchronous>, transform_indices = @transform_5, window_bounds = array<i64: 128, 128>}, {pipeline_mode = #tpu.pipeline_mode<synchronous>, transform_indices = @transform_6, window_bounds = array<i64: 64, 128>}, {pipeline_mode = #tpu.pipeline_mode<synchronous>, transform_indices = @transform_7, window_bounds = array<i64: 1, 128>}, {pipeline_mode = #tpu.pipeline_mode<synchronous>, transform_indices = @transform_8, window_bounds = array<i64: 1, 128>}, {transform_indices = @transform_9, window_bounds = array<i64: 1, 16, 128>}]} {
    %c0_i32 = arith.constant 0 : i32
    %0 = arith.cmpi eq, %arg1, %c0_i32 : i32
    %1 = arith.extui %0 : i1 to i32
    %c0_i32_0 = arith.constant 0 : i32
    %2 = arith.cmpi ne, %1, %c0_i32_0 : i32
    scf.if %2 {
      %c0_62 = arith.constant 0 : index
      %c0_63 = arith.constant 0 : index
      %c0_64 = arith.constant 0 : index
      %133 = vector.load %arg3[%c0_62, %c0_63, %c0_64] : memref<1x128x128xf32, #tpu.memory_space<vmem>>, vector<1x128x128xf32>
      %134 = vector.shape_cast %133 : vector<1x128x128xf32> to vector<128x128xf32>
      %c0_65 = arith.constant 0 : index
      %c0_66 = arith.constant 0 : index
      %135 = vector.load %arg7[%c0_65, %c0_66] : memref<128x128xf32, #tpu.memory_space<vmem>>, vector<128x128xf32>
      %cst_67 = arith.constant dense<0.000000e+00> : vector<128x128xf32>
      %136 = tpu.matmul %134, %135, %cst_67 {dimension_numbers = #tpu.dot_dimension_numbers<[1], [0], [0], [1], [0, 0, 1, 1], [], []>} : vector<128x128xf32>, vector<128x128xf32>, vector<128x128xf32> -> vector<128x128xf32>
      %c0_68 = arith.constant 0 : index
      %c0_69 = arith.constant 0 : index
      %137 = vector.load %arg12[%c0_68, %c0_69] : memref<128x128xf32, #tpu.memory_space<vmem>>, vector<128x128xf32>
      tpu.vector_store %arg12[%c0_68, %c0_69], %136 {strides = array<i32>} : memref<128x128xf32, #tpu.memory_space<vmem>>, vector<128x128xf32>,
      %c0_70 = arith.constant 0 : index
      %c0_71 = arith.constant 0 : index
      %138 = vector.load %arg5[%c0_70, %c0_71] : memref<1x128xf32, #tpu.memory_space<vmem>>, vector<1x128xf32>
      %c0_72 = arith.constant 0 : index
      %c0_73 = arith.constant 0 : index
      %139 = vector.load %arg12[%c0_72, %c0_73] : memref<128x128xf32, #tpu.memory_space<vmem>>, vector<1x128xf32>
      tpu.vector_store %arg12[%c0_72, %c0_73], %138 {strides = array<i32>} : memref<128x128xf32, #tpu.memory_space<vmem>>, vector<1x128xf32>,
    } else {
    }
    %c0 = arith.constant 0 : index
    %c0_1 = arith.constant 0 : index
    %c0_2 = arith.constant 0 : index
    %3 = vector.load %arg2[%c0, %c0_1, %c0_2] : memref<1x16x128xf32, #tpu.memory_space<vmem>>, vector<1x16x128xf32>
    %4 = vector.shape_cast %3 : vector<1x16x128xf32> to vector<16x128xf32>
    %5 = tpu.iota {dimensions = array<i32: 1>} : vector<1x128xi32>
    %c32_i32 = arith.constant 32 : i32
    %6 = vector.broadcast %c32_i32 : i32 to vector<1x128xi32>
    %7 = arith.cmpi slt, %5, %6 : vector<1x128xi32>
    %8 = arith.extui %7 : vector<1x128xi1> to vector<1x128xi32>
    %9 = arith.sitofp %8 : vector<1x128xi32> to vector<1x128xf32>
    %cst = arith.constant dense<0.000000e+00> : vector<16xf32>
    %10 = vector.multi_reduction <add>, %4, %cst [1] : vector<16x128xf32> to vector<16xf32>
    %11 = vector.shape_cast %10 : vector<16xf32> to vector<16x1xf32>
    %cst_3 = arith.constant 3.125000e-02 : f32
    %12 = vector.broadcast %cst_3 : f32 to vector<16x1xf32>
    %13 = arith.mulf %11, %12 : vector<16x1xf32>
    %14 = vector.broadcast %13 : vector<16x1xf32> to vector<16x128xf32>
    %15 = arith.subf %4, %14 : vector<16x128xf32>
    %16 = vector.broadcast %9 : vector<1x128xf32> to vector<16x128xf32>
    %17 = arith.mulf %15, %16 : vector<16x128xf32>
    %18 = arith.mulf %17, %17 : vector<16x128xf32>
    %cst_4 = arith.constant dense<0.000000e+00> : vector<16xf32>
    %19 = vector.multi_reduction <add>, %18, %cst_4 [1] : vector<16x128xf32> to vector<16xf32>
    %20 = vector.shape_cast %19 : vector<16xf32> to vector<16x1xf32>
    %cst_5 = arith.constant 3.125000e-02 : f32
    %21 = vector.broadcast %cst_5 : f32 to vector<16x1xf32>
    %22 = arith.mulf %20, %21 : vector<16x1xf32>
    %cst_6 = arith.constant 9.99999974E-6 : f32
    %23 = vector.broadcast %cst_6 : f32 to vector<16x1xf32>
    %24 = arith.addf %22, %23 : vector<16x1xf32>
    %25 = math.rsqrt %24 : vector<16x1xf32>
    %26 = vector.broadcast %25 : vector<16x1xf32> to vector<16x128xf32>
    %27 = arith.mulf %17, %26 : vector<16x128xf32>
    %c0_7 = arith.constant 0 : index
    %c0_8 = arith.constant 0 : index
    %28 = vector.load %arg9[%c0_7, %c0_8] : memref<1x128xf32, #tpu.memory_space<vmem>>, vector<1x128xf32>
    %29 = vector.broadcast %28 : vector<1x128xf32> to vector<16x128xf32>
    %30 = arith.mulf %27, %29 : vector<16x128xf32>
    %c0_9 = arith.constant 0 : index
    %c0_10 = arith.constant 0 : index
    %31 = vector.load %arg6[%c0_9, %c0_10] : memref<128x64xf32, #tpu.memory_space<vmem>>, vector<128x64xf32>
    %cst_11 = arith.constant dense<0.000000e+00> : vector<16x64xf32>
    %32 = tpu.matmul %30, %31, %cst_11 {dimension_numbers = #tpu.dot_dimension_numbers<[1], [0], [0], [1], [0, 0, 1, 1], [], []>} : vector<16x128xf32>, vector<128x64xf32>, vector<16x64xf32> -> vector<16x64xf32>
    %c0_12 = arith.constant 0 : index
    %c0_13 = arith.constant 0 : index
    %33 = vector.load %arg4[%c0_12, %c0_13] : memref<1x128xf32, #tpu.memory_space<vmem>>, vector<1x128xf32>
    %34 = vector.extract_strided_slice %32 {offsets = [0, 0], sizes = [16, 16], strides = [1, 1]} : vector<16x64xf32> to vector<16x16xf32>
    %c0_14 = arith.constant 0 : index
    %c0_15 = arith.constant 0 : index
    %35 = vector.load %arg12[%c0_14, %c0_15] : memref<128x128xf32, #tpu.memory_space<vmem>>, vector<128x16xf32>
    %c0_16 = arith.constant 0 : index
    %c64 = arith.constant 64 : index
    %36 = vector.load %arg12[%c0_16, %c64] : memref<128x128xf32, #tpu.memory_space<vmem>>, vector<128x16xf32>
    %cst_17 = arith.constant dense<0.000000e+00> : vector<16x128xf32>
    %37 = tpu.matmul %34, %35, %cst_17 {dimension_numbers = #tpu.dot_dimension_numbers<[1], [1], [0], [0], [0, 0, 1, 0], [], []>} : vector<16x16xf32>, vector<128x16xf32>, vector<16x128xf32> -> vector<16x128xf32>
    %38 = vector.broadcast %33 : vector<1x128xf32> to vector<16x128xf32>
    %39 = arith.addf %37, %38 : vector<16x128xf32>
    %cst_18 = arith.constant dense<0xFF800000> : vector<16xf32>
    %40 = vector.multi_reduction <maximumf>, %39, %cst_18 [1] : vector<16x128xf32> to vector<16xf32>
    %41 = vector.shape_cast %40 : vector<16xf32> to vector<16x1xf32>
    %42 = vector.broadcast %41 : vector<16x1xf32> to vector<16x128xf32>
    %43 = arith.subf %39, %42 : vector<16x128xf32>
    %44 = math.exp %43 : vector<16x128xf32>
    %cst_19 = arith.constant dense<0.000000e+00> : vector<16xf32>
    %45 = vector.multi_reduction <add>, %44, %cst_19 [1] : vector<16x128xf32> to vector<16xf32>
    %46 = vector.shape_cast %45 : vector<16xf32> to vector<16x1xf32>
    %47 = tpu.reciprocal %46 : vector<16x1xf32> -> vector<16x1xf32>
    %cst_20 = arith.constant dense<0.000000e+00> : vector<16x16xf32>
    %48 = tpu.matmul %44, %36, %cst_20 {dimension_numbers = #tpu.dot_dimension_numbers<[1], [0], [0], [1], [0, 0, 1, 1], [], []>} : vector<16x128xf32>, vector<128x16xf32>, vector<16x16xf32> -> vector<16x16xf32>
    %49 = vector.broadcast %47 : vector<16x1xf32> to vector<16x16xf32>
    %50 = arith.mulf %48, %49 : vector<16x16xf32>
    %c0_21 = arith.constant 0 : index
    %c0_22 = arith.constant 0 : index
    %51 = vector.load %arg13[%c0_21, %c0_22] : memref<16x64xf32, #tpu.memory_space<vmem>>, vector<16x16xf32>
    tpu.vector_store %arg13[%c0_21, %c0_22], %50 {strides = array<i32>} : memref<16x64xf32, #tpu.memory_space<vmem>>, vector<16x16xf32>,
    %52 = vector.extract_strided_slice %32 {offsets = [0, 16], sizes = [16, 16], strides = [1, 1]} : vector<16x64xf32> to vector<16x16xf32>
    %c0_23 = arith.constant 0 : index
    %c16 = arith.constant 16 : index
    %53 = vector.load %arg12[%c0_23, %c16] : memref<128x128xf32, #tpu.memory_space<vmem>>, vector<128x16xf32>
    %c0_24 = arith.constant 0 : index
    %c80 = arith.constant 80 : index
    %54 = vector.load %arg12[%c0_24, %c80] : memref<128x128xf32, #tpu.memory_space<vmem>>, vector<128x16xf32>
    %cst_25 = arith.constant dense<0.000000e+00> : vector<16x128xf32>
    %55 = tpu.matmul %52, %53, %cst_25 {dimension_numbers = #tpu.dot_dimension_numbers<[1], [1], [0], [0], [0, 0, 1, 0], [], []>} : vector<16x16xf32>, vector<128x16xf32>, vector<16x128xf32> -> vector<16x128xf32>
    %56 = vector.broadcast %33 : vector<1x128xf32> to vector<16x128xf32>
    %57 = arith.addf %55, %56 : vector<16x128xf32>
    %cst_26 = arith.constant dense<0xFF800000> : vector<16xf32>
    %58 = vector.multi_reduction <maximumf>, %57, %cst_26 [1] : vector<16x128xf32> to vector<16xf32>
    %59 = vector.shape_cast %58 : vector<16xf32> to vector<16x1xf32>
    %60 = vector.broadcast %59 : vector<16x1xf32> to vector<16x128xf32>
    %61 = arith.subf %57, %60 : vector<16x128xf32>
    %62 = math.exp %61 : vector<16x128xf32>
    %cst_27 = arith.constant dense<0.000000e+00> : vector<16xf32>
    %63 = vector.multi_reduction <add>, %62, %cst_27 [1] : vector<16x128xf32> to vector<16xf32>
    %64 = vector.shape_cast %63 : vector<16xf32> to vector<16x1xf32>
    %65 = tpu.reciprocal %64 : vector<16x1xf32> -> vector<16x1xf32>
    %cst_28 = arith.constant dense<0.000000e+00> : vector<16x16xf32>
    %66 = tpu.matmul %62, %54, %cst_28 {dimension_numbers = #tpu.dot_dimension_numbers<[1], [0], [0], [1], [0, 0, 1, 1], [], []>} : vector<16x128xf32>, vector<128x16xf32>, vector<16x16xf32> -> vector<16x16xf32>
    %67 = vector.broadcast %65 : vector<16x1xf32> to vector<16x16xf32>
    %68 = arith.mulf %66, %67 : vector<16x16xf32>
    %c0_29 = arith.constant 0 : index
    %c16_30 = arith.constant 16 : index
    %69 = vector.load %arg13[%c0_29, %c16_30] : memref<16x64xf32, #tpu.memory_space<vmem>>, vector<16x16xf32>
    tpu.vector_store %arg13[%c0_29, %c16_30], %68 {strides = array<i32>} : memref<16x64xf32, #tpu.memory_space<vmem>>, vector<16x16xf32>,
    %70 = vector.extract_strided_slice %32 {offsets = [0, 32], sizes = [16, 16], strides = [1, 1]} : vector<16x64xf32> to vector<16x16xf32>
    %c0_31 = arith.constant 0 : index
    %c32 = arith.constant 32 : index
    %71 = vector.load %arg12[%c0_31, %c32] : memref<128x128xf32, #tpu.memory_space<vmem>>, vector<128x16xf32>
    %c0_32 = arith.constant 0 : index
    %c96 = arith.constant 96 : index
    %72 = vector.load %arg12[%c0_32, %c96] : memref<128x128xf32, #tpu.memory_space<vmem>>, vector<128x16xf32>
    %cst_33 = arith.constant dense<0.000000e+00> : vector<16x128xf32>
    %73 = tpu.matmul %70, %71, %cst_33 {dimension_numbers = #tpu.dot_dimension_numbers<[1], [1], [0], [0], [0, 0, 1, 0], [], []>} : vector<16x16xf32>, vector<128x16xf32>, vector<16x128xf32> -> vector<16x128xf32>
    %74 = vector.broadcast %33 : vector<1x128xf32> to vector<16x128xf32>
    %75 = arith.addf %73, %74 : vector<16x128xf32>
    %cst_34 = arith.constant dense<0xFF800000> : vector<16xf32>
    %76 = vector.multi_reduction <maximumf>, %75, %cst_34 [1] : vector<16x128xf32> to vector<16xf32>
    %77 = vector.shape_cast %76 : vector<16xf32> to vector<16x1xf32>
    %78 = vector.broadcast %77 : vector<16x1xf32> to vector<16x128xf32>
    %79 = arith.subf %75, %78 : vector<16x128xf32>
    %80 = math.exp %79 : vector<16x128xf32>
    %cst_35 = arith.constant dense<0.000000e+00> : vector<16xf32>
    %81 = vector.multi_reduction <add>, %80, %cst_35 [1] : vector<16x128xf32> to vector<16xf32>
    %82 = vector.shape_cast %81 : vector<16xf32> to vector<16x1xf32>
    %83 = tpu.reciprocal %82 : vector<16x1xf32> -> vector<16x1xf32>
    %cst_36 = arith.constant dense<0.000000e+00> : vector<16x16xf32>
    %84 = tpu.matmul %80, %72, %cst_36 {dimension_numbers = #tpu.dot_dimension_numbers<[1], [0], [0], [1], [0, 0, 1, 1], [], []>} : vector<16x128xf32>, vector<128x16xf32>, vector<16x16xf32> -> vector<16x16xf32>
    %85 = vector.broadcast %83 : vector<16x1xf32> to vector<16x16xf32>
    %86 = arith.mulf %84, %85 : vector<16x16xf32>
    %c0_37 = arith.constant 0 : index
    %c32_38 = arith.constant 32 : index
    %87 = vector.load %arg13[%c0_37, %c32_38] : memref<16x64xf32, #tpu.memory_space<vmem>>, vector<16x16xf32>
    tpu.vector_store %arg13[%c0_37, %c32_38], %86 {strides = array<i32>} : memref<16x64xf32, #tpu.memory_space<vmem>>, vector<16x16xf32>,
    %88 = vector.extract_strided_slice %32 {offsets = [0, 48], sizes = [16, 16], strides = [1, 1]} : vector<16x64xf32> to vector<16x16xf32>
    %c0_39 = arith.constant 0 : index
    %c48 = arith.constant 48 : index
    %89 = vector.load %arg12[%c0_39, %c48] : memref<128x128xf32, #tpu.memory_space<vmem>>, vector<128x16xf32>
    %c0_40 = arith.constant 0 : index
    %c112 = arith.constant 112 : index
    %90 = vector.load %arg12[%c0_40, %c112] : memref<128x128xf32, #tpu.memory_space<vmem>>, vector<128x16xf32>
    %cst_41 = arith.constant dense<0.000000e+00> : vector<16x128xf32>
    %91 = tpu.matmul %88, %89, %cst_41 {dimension_numbers = #tpu.dot_dimension_numbers<[1], [1], [0], [0], [0, 0, 1, 0], [], []>} : vector<16x16xf32>, vector<128x16xf32>, vector<16x128xf32> -> vector<16x128xf32>
    %92 = vector.broadcast %33 : vector<1x128xf32> to vector<16x128xf32>
    %93 = arith.addf %91, %92 : vector<16x128xf32>
    %cst_42 = arith.constant dense<0xFF800000> : vector<16xf32>
    %94 = vector.multi_reduction <maximumf>, %93, %cst_42 [1] : vector<16x128xf32> to vector<16xf32>
    %95 = vector.shape_cast %94 : vector<16xf32> to vector<16x1xf32>
    %96 = vector.broadcast %95 : vector<16x1xf32> to vector<16x128xf32>
    %97 = arith.subf %93, %96 : vector<16x128xf32>
    %98 = math.exp %97 : vector<16x128xf32>
    %cst_43 = arith.constant dense<0.000000e+00> : vector<16xf32>
    %99 = vector.multi_reduction <add>, %98, %cst_43 [1] : vector<16x128xf32> to vector<16xf32>
    %100 = vector.shape_cast %99 : vector<16xf32> to vector<16x1xf32>
    %101 = tpu.reciprocal %100 : vector<16x1xf32> -> vector<16x1xf32>
    %cst_44 = arith.constant dense<0.000000e+00> : vector<16x16xf32>
    %102 = tpu.matmul %98, %90, %cst_44 {dimension_numbers = #tpu.dot_dimension_numbers<[1], [0], [0], [1], [0, 0, 1, 1], [], []>} : vector<16x128xf32>, vector<128x16xf32>, vector<16x16xf32> -> vector<16x16xf32>
    %103 = vector.broadcast %101 : vector<16x1xf32> to vector<16x16xf32>
    %104 = arith.mulf %102, %103 : vector<16x16xf32>
    %c0_45 = arith.constant 0 : index
    %c48_46 = arith.constant 48 : index
    %105 = vector.load %arg13[%c0_45, %c48_46] : memref<16x64xf32, #tpu.memory_space<vmem>>, vector<16x16xf32>
    tpu.vector_store %arg13[%c0_45, %c48_46], %104 {strides = array<i32>} : memref<16x64xf32, #tpu.memory_space<vmem>>, vector<16x16xf32>,
    %c0_47 = arith.constant 0 : index
    %c0_48 = arith.constant 0 : index
    %106 = vector.load %arg13[%c0_47, %c0_48] : memref<16x64xf32, #tpu.memory_space<vmem>>, vector<16x64xf32>
    %c0_49 = arith.constant 0 : index
    %c0_50 = arith.constant 0 : index
    %107 = vector.load %arg8[%c0_49, %c0_50] : memref<64x128xf32, #tpu.memory_space<vmem>>, vector<64x128xf32>
    %cst_51 = arith.constant dense<0.000000e+00> : vector<16x128xf32>
    %108 = tpu.matmul %106, %107, %cst_51 {dimension_numbers = #tpu.dot_dimension_numbers<[1], [0], [0], [1], [0, 0, 1, 1], [], []>} : vector<16x64xf32>, vector<64x128xf32>, vector<16x128xf32> -> vector<16x128xf32>
    %cst_52 = arith.constant dense<0.000000e+00> : vector<16xf32>
    %109 = vector.multi_reduction <add>, %108, %cst_52 [1] : vector<16x128xf32> to vector<16xf32>
    %110 = vector.shape_cast %109 : vector<16xf32> to vector<16x1xf32>
    %cst_53 = arith.constant 3.125000e-02 : f32
    %111 = vector.broadcast %cst_53 : f32 to vector<16x1xf32>
    %112 = arith.mulf %110, %111 : vector<16x1xf32>
    %113 = vector.broadcast %112 : vector<16x1xf32> to vector<16x128xf32>
    %114 = arith.subf %108, %113 : vector<16x128xf32>
    %115 = vector.broadcast %9 : vector<1x128xf32> to vector<16x128xf32>
    %116 = arith.mulf %114, %115 : vector<16x128xf32>
    %117 = arith.mulf %116, %116 : vector<16x128xf32>
    %cst_54 = arith.constant dense<0.000000e+00> : vector<16xf32>
    %118 = vector.multi_reduction <add>, %117, %cst_54 [1] : vector<16x128xf32> to vector<16xf32>
    %119 = vector.shape_cast %118 : vector<16xf32> to vector<16x1xf32>
    %cst_55 = arith.constant 3.125000e-02 : f32
    %120 = vector.broadcast %cst_55 : f32 to vector<16x1xf32>
    %121 = arith.mulf %119, %120 : vector<16x1xf32>
    %cst_56 = arith.constant 9.99999974E-6 : f32
    %122 = vector.broadcast %cst_56 : f32 to vector<16x1xf32>
    %123 = arith.addf %121, %122 : vector<16x1xf32>
    %124 = math.rsqrt %123 : vector<16x1xf32>
    %125 = vector.broadcast %124 : vector<16x1xf32> to vector<16x128xf32>
    %126 = arith.mulf %116, %125 : vector<16x128xf32>
    %c0_57 = arith.constant 0 : index
    %c0_58 = arith.constant 0 : index
    %127 = vector.load %arg10[%c0_57, %c0_58] : memref<1x128xf32, #tpu.memory_space<vmem>>, vector<1x128xf32>
    %128 = vector.broadcast %127 : vector<1x128xf32> to vector<16x128xf32>
    %129 = arith.mulf %126, %128 : vector<16x128xf32>
    %c0_59 = arith.constant 0 : index
    %c0_60 = arith.constant 0 : index
    %c0_61 = arith.constant 0 : index
    %130 = vector.load %arg11[%c0_59, %c0_60, %c0_61] : memref<1x16x128xf32, #tpu.memory_space<vmem>>, vector<1x16x128xf32>
    %131 = vector.shape_cast %130 : vector<1x16x128xf32> to vector<16x128xf32>
    %132 = vector.shape_cast %129 : vector<16x128xf32> to vector<1x16x128xf32>
    tpu.vector_store %arg11[%c0_59, %c0_60, %c0_61], %132 {strides = array<i32>} : memref<1x16x128xf32, #tpu.memory_space<vmem>>, vector<1x16x128xf32>,
    return
  }
  func.func @transform_0(%arg0: i32, %arg1: i32) -> (i32, i32, i32) {
    %c0_i32 = arith.constant 0 : i32
    %c0_i32_0 = arith.constant 0 : i32
    return %arg0, %arg1, %c0_i32 : i32, i32, i32
  }
  func.func @transform_1(%arg0: i32, %arg1: i32) -> (i32, i32, i32) {
    %c0_i32 = arith.constant 0 : i32
    %c0_i32_0 = arith.constant 0 : i32
    %c0_i32_1 = arith.constant 0 : i32
    return %arg0, %c0_i32, %c0_i32_0 : i32, i32, i32
  }
  func.func @transform_2(%arg0: i32, %arg1: i32) -> (i32, i32) {
    %c0_i32 = arith.constant 0 : i32
    %c0_i32_0 = arith.constant 0 : i32
    %c0_i32_1 = arith.constant 0 : i32
    return %c0_i32, %c0_i32_0 : i32, i32
  }
  func.func @transform_3(%arg0: i32, %arg1: i32) -> (i32, i32) {
    %c0_i32 = arith.constant 0 : i32
    %c0_i32_0 = arith.constant 0 : i32
    %c0_i32_1 = arith.constant 0 : i32
    return %c0_i32, %c0_i32_0 : i32, i32
  }
  func.func @transform_4(%arg0: i32, %arg1: i32) -> (i32, i32) {
    %c0_i32 = arith.constant 0 : i32
    %c0_i32_0 = arith.constant 0 : i32
    %c0_i32_1 = arith.constant 0 : i32
    return %c0_i32, %c0_i32_0 : i32, i32
  }
  func.func @transform_5(%arg0: i32, %arg1: i32) -> (i32, i32) {
    %c0_i32 = arith.constant 0 : i32
    %c0_i32_0 = arith.constant 0 : i32
    %c0_i32_1 = arith.constant 0 : i32
    return %c0_i32, %c0_i32_0 : i32, i32
  }
  func.func @transform_6(%arg0: i32, %arg1: i32) -> (i32, i32) {
    %c0_i32 = arith.constant 0 : i32
    %c0_i32_0 = arith.constant 0 : i32
    %c0_i32_1 = arith.constant 0 : i32
    return %c0_i32, %c0_i32_0 : i32, i32
  }
  func.func @transform_7(%arg0: i32, %arg1: i32) -> (i32, i32) {
    %c0_i32 = arith.constant 0 : i32
    %c0_i32_0 = arith.constant 0 : i32
    %c0_i32_1 = arith.constant 0 : i32
    return %c0_i32, %c0_i32_0 : i32, i32
  }
  func.func @transform_8(%arg0: i32, %arg1: i32) -> (i32, i32) {
    %c0_i32 = arith.constant 0 : i32
    %c0_i32_0 = arith.constant 0 : i32
    %c0_i32_1 = arith.constant 0 : i32
    return %c0_i32, %c0_i32_0 : i32, i32
  }
  func.func @transform_9(%arg0: i32, %arg1: i32) -> (i32, i32, i32) {
    %c0_i32 = arith.constant 0 : i32
    %c0_i32_0 = arith.constant 0 : i32
    return %arg0, %arg1, %c0_i32 : i32, i32, i32
  }
}

</mosaic_0001>

<llo_original>
// kernel: tpu_custom_call.1
$region0: #{tpu_custom_call.1}
  #allocation0 [shape = 'u32[]', space=smem, size = 0x4, offset = 0x4, fixed_abs, tag = 'smem constant byte address 0x4 - core index']
  #allocation1 [shape = 'u32[72,128]{1,0:T(1,128)}', space=vmem, size = 0x9000, scoped, tag = 'internal scratch']
  #allocation2 [shape = 'f32[128,128]{1,0:T(8,128)}', space=vmem, size = 0x10000, scoped, tag = 'scratch operand']
  #allocation3 [shape = 'f32[16,64]{1,0:T(8,128)}', space=vmem, size = 0x2000, scoped, tag = 'scratch operand']
  %s0 = inlined_call_operand.hbm [shape: f32[2,16,128], index: 0, kind: input, shape index: {}]
  %s1 = inlined_call_operand.hbm [shape: f32[2,128,128], index: 1, kind: input, shape index: {}]
  %s2 = inlined_call_operand.vmem [shape: f32[1,128], index: 2, kind: input, shape index: {}]
  %s3 = inlined_call_operand.vmem [shape: f32[1,128], index: 3, kind: input, shape index: {}]
  %s4 = inlined_call_operand.vmem [shape: f32[128,64], index: 4, kind: input, shape index: {}]
  %s5 = inlined_call_operand.vmem [shape: f32[128,128], index: 5, kind: input, shape index: {}]
  %s6 = inlined_call_operand.vmem [shape: f32[64,128], index: 6, kind: input, shape index: {}]
  %s7 = inlined_call_operand.vmem [shape: f32[1,128], index: 7, kind: input, shape index: {}]
  %s8 = inlined_call_operand.vmem [shape: f32[1,128], index: 8, kind: input, shape index: {}]
  %s9 = inlined_call_operand.hbm [shape: f32[2,16,128], index: 9, kind: output, shape index: {}]
  %s10 = sld [smem:[#allocation0]]
  $region81: #{tpu_custom_call.1} parent=0
    _
  %s12 = ssub.s32 1, %s10
  %s13 = scalar_select 0, %s12, %s10
  $region1: #{tpu_custom_call.1} parent=0
    #allocation4 [shape = 'u8[16384]{0}', space=vmem, size = 0x4000, scoped, tag = 'input window, operand 0']
    #allocation5 [shape = 's32[2]{0}', space=sflag, size = 0x8, scoped, tag = 'scoped memory for tpu_custom_call.1']
    #allocation6 [shape = 's32[2]{0}', space=sflag, size = 0x8, scoped, tag = 'scoped memory for tpu_custom_call.1']
    #allocation7 [shape = 'u8[131072]{0}', space=vmem, size = 0x20000, scoped, tag = 'input window, operand 1']
    #allocation8 [shape = 's32[2]{0}', space=sflag, size = 0x8, scoped, tag = 'scoped memory for tpu_custom_call.1']
    #allocation9 [shape = 'u8[16384]{0}', space=vmem, size = 0x4000, scoped, tag = 'output window, operand 0']
    %14 = vsyncpa [#allocation5], 0
    %s15 = scalar_lea.sflag [#allocation5], 1
    %16 = vsyncpa %s15, 0
    %17 = vsyncpa [#allocation8], 0
    %s18 = scalar_lea.sflag [#allocation8], 1
    %19 = vsyncpa %s18, 0
    %20 = vsyncpa [#allocation6], 0
    %s21 = scalar_lea.sflag [#allocation6], 1
    %22 = vsyncpa %s21, 0
    loop: start=0, step=1, limit=4
    $region2: #{tpu_custom_call.1} parent=1 // loop_pre_header
      _
    $region3: #{tpu_custom_call.1} parent=1 // loop_header
      %s24 = sphi 0, %s28
      %p25 = scmp.ge.s32.totalorder %s24, 4
      %s31 = sphi 0, %s43
      %s32 = sphi 0, %s39
      %s33 = sphi 0, %s31
      %s34 = sphi 0, %s32
      %s35 = sphi 0, %s33
      %s36 = sphi 0, %s34
      %s48 = sphi 0, %s50
      %s51 = sphi 0, %s48
      %s52 = sphi 0, %s51
      %s68 = sphi 0, %s52
      %s74 = sphi 0, %s76
      %s77 = sphi 0, %s74
      %s78 = sphi 0, %s77
      %s94 = sphi 0, %s78
      %s98 = sphi 0, %s98
      %s100 = sphi 0, %s98
      %s101 = sphi 0, %s100
      %s115 = sphi 0, %s101
      %s119 = sphi 0, %s119
      %s121 = sphi 0, %s119
      %s122 = sphi 0, %s121
      %s136 = sphi 0, %s122
      %s140 = sphi 0, %s140
      %s142 = sphi 0, %s140
      %s143 = sphi 0, %s142
      %s157 = sphi 0, %s143
      %s161 = sphi 0, %s161
      %s163 = sphi 0, %s161
      %s164 = sphi 0, %s163
      %s178 = sphi 0, %s164
      %s182 = sphi 0, %s182
      %s184 = sphi 0, %s182
      %s185 = sphi 0, %s184
      %s199 = sphi 0, %s185
      %s203 = sphi 0, %s203
      %s205 = sphi 0, %s203
      %s206 = sphi 0, %s205
      %s220 = sphi 0, %s206
      %s224 = sphi 0, %s224
      %s226 = sphi 0, %s224
      %s227 = sphi 0, %s226
      %s241 = sphi 0, %s227
      %s249 = sphi 0, %s251
      %s252 = sphi 0, %s249
      %s253 = sphi 0, %s252
      %s269 = sphi 0, %s253
    $region4: #{tpu_custom_call.1} parent=1 // loop_header_branch
      %27 = sbr.rel (%p25) target = $region8
    $region5: #{tpu_custom_call.1} parent=1 // loop_body
      %s29 = ssub.s32 %s24, 1
      %s30 = ssub.s32 %s24, 2
      %s37 = sadd.s32 1, %s32
      %p38 = scmp.ge.s32.totalorder %s37, 1
      %s39 = scalar_select %p38, 0, %s37
      %s40 = sadd.s32 1, %s31
      %s41 = scalar_select %p38, %s40, %s31
      %p42 = scmp.ge.s32.totalorder %s41, 2
      %s43 = scalar_select %p42, 0, %s41
      %s44 = ssub.s32 %s31, %s43
      %s45 = ssub.s32 %s32, %s39
      %s46 = sor.u32 %s44, %s45
      %p47 = scmp.eq.s32.totalorder %s46, 0
      %s49 = sadd.s32 %s48, 1
      %s50 = scalar_select %p47, %s48, %s49
      %p53 = pneg %p47
      %p54 = scmp.eq.s32.totalorder %s24, 1
      %p55 = por %p53, %p54
      %p56 = scmp.ne.s32.totalorder %s48, %s51
      %p57 = scmp.eq.s32.totalorder %s24, 0
      %p58 = por %p56, %p57
      %p59 = scmp.ne.s32.totalorder %s48, %s51
      %p60 = scmp.eq.s32.totalorder %s29, 1
      %p61 = por %p59, %p60
      %p62 = scmp.ne.s32.totalorder %s51, %s52
      %p63 = scmp.eq.s32.totalorder %s29, 0
      %p64 = por %p62, %p63
      %p65 = scmp.ne.s32.totalorder %s51, %s52
      %p66 = scmp.eq.s32.totalorder %s30, 1
      %p67 = por %p65, %p66
      %p69 = scmp.ne.s32.totalorder %s52, %s68
      %p70 = scmp.eq.s32.totalorder %s30, 0
      %p71 = por %p69, %p70
      %s72 = ssub.s32 %s31, %s43
      %p73 = scmp.eq.s32.totalorder %s72, 0
      %s75 = sadd.s32 %s74, 1
      %s76 = scalar_select %p73, %s74, %s75
      %p79 = pneg %p73
      %p80 = scmp.eq.s32.totalorder %s24, 1
      %p81 = por %p79, %p80
      %p82 = scmp.ne.s32.totalorder %s74, %s77
      %p83 = scmp.eq.s32.totalorder %s24, 0
      %p84 = por %p82, %p83
      %p85 = scmp.ne.s32.totalorder %s74, %s77
      %p86 = scmp.eq.s32.totalorder %s29, 1
      %p87 = por %p85, %p86
      %p88 = scmp.ne.s32.totalorder %s77, %s78
      %p89 = scmp.eq.s32.totalorder %s29, 0
      %p90 = por %p88, %p89
      %p91 = scmp.ne.s32.totalorder %s77, %s78
      %p92 = scmp.eq.s32.totalorder %s30, 1
      %p93 = por %p91, %p92
      %p95 = scmp.ne.s32.totalorder %s78, %s94
      %p96 = scmp.eq.s32.totalorder %s30, 0
      %p97 = por %p95, %p96
      %s99 = sadd.s32 %s98, 1
      %p102 = scmp.eq.s32.totalorder %s24, 1
      %p103 = scmp.ne.s32.totalorder %s98, %s100
      %p104 = scmp.eq.s32.totalorder %s24, 0
      %p105 = por %p103, %p104
      %p106 = scmp.ne.s32.totalorder %s98, %s100
      %p107 = scmp.eq.s32.totalorder %s29, 1
      %p108 = por %p106, %p107
      %p109 = scmp.ne.s32.totalorder %s100, %s101
      %p110 = scmp.eq.s32.totalorder %s29, 0
      %p111 = por %p109, %p110
      %p112 = scmp.ne.s32.totalorder %s100, %s101
      %p113 = scmp.eq.s32.totalorder %s30, 1
      %p114 = por %p112, %p113
      %p116 = scmp.ne.s32.totalorder %s101, %s115
      %p117 = scmp.eq.s32.totalorder %s30, 0
      %p118 = por %p116, %p117
      %s120 = sadd.s32 %s119, 1
      %p123 = scmp.eq.s32.totalorder %s24, 1
      %p124 = scmp.ne.s32.totalorder %s119, %s121
      %p125 = scmp.eq.s32.totalorder %s24, 0
      %p126 = por %p124, %p125
      %p127 = scmp.ne.s32.totalorder %s119, %s121
      %p128 = scmp.eq.s32.totalorder %s29, 1
      %p129 = por %p127, %p128
      %p130 = scmp.ne.s32.totalorder %s121, %s122
      %p131 = scmp.eq.s32.totalorder %s29, 0
      %p132 = por %p130, %p131
      %p133 = scmp.ne.s32.totalorder %s121, %s122
      %p134 = scmp.eq.s32.totalorder %s30, 1
      %p135 = por %p133, %p134
      %p137 = scmp.ne.s32.totalorder %s122, %s136
      %p138 = scmp.eq.s32.totalorder %s30, 0
      %p139 = por %p137, %p138
      %s141 = sadd.s32 %s140, 1
      %p144 = scmp.eq.s32.totalorder %s24, 1
      %p145 = scmp.ne.s32.totalorder %s140, %s142
      %p146 = scmp.eq.s32.totalorder %s24, 0
      %p147 = por %p145, %p146
      %p148 = scmp.ne.s32.totalorder %s140, %s142
      %p149 = scmp.eq.s32.totalorder %s29, 1
      %p150 = por %p148, %p149
      %p151 = scmp.ne.s32.totalorder %s142, %s143
      %p152 = scmp.eq.s32.totalorder %s29, 0
      %p153 = por %p151, %p152
      %p154 = scmp.ne.s32.totalorder %s142, %s143
      %p155 = scmp.eq.s32.totalorder %s30, 1
      %p156 = por %p154, %p155
      %p158 = scmp.ne.s32.totalorder %s143, %s157
      %p159 = scmp.eq.s32.totalorder %s30, 0
      %p160 = por %p158, %p159
      %s162 = sadd.s32 %s161, 1
      %p165 = scmp.eq.s32.totalorder %s24, 1
      %p166 = scmp.ne.s32.totalorder %s161, %s163
      %p167 = scmp.eq.s32.totalorder %s24, 0
      %p168 = por %p166, %p167
      %p169 = scmp.ne.s32.totalorder %s161, %s163
      %p170 = scmp.eq.s32.totalorder %s29, 1
      %p171 = por %p169, %p170
      %p172 = scmp.ne.s32.totalorder %s163, %s164
      %p173 = scmp.eq.s32.totalorder %s29, 0
      %p174 = por %p172, %p173
      %p175 = scmp.ne.s32.totalorder %s163, %s164
      %p176 = scmp.eq.s32.totalorder %s30, 1
      %p177 = por %p175, %p176
      %p179 = scmp.ne.s32.totalorder %s164, %s178
      %p180 = scmp.eq.s32.totalorder %s30, 0
      %p181 = por %p179, %p180
      %s183 = sadd.s32 %s182, 1
      %p186 = scmp.eq.s32.totalorder %s24, 1
      %p187 = scmp.ne.s32.totalorder %s182, %s184
      %p188 = scmp.eq.s32.totalorder %s24, 0
      %p189 = por %p187, %p188
      %p190 = scmp.ne.s32.totalorder %s182, %s184
      %p191 = scmp.eq.s32.totalorder %s29, 1
      %p192 = por %p190, %p191
      %p193 = scmp.ne.s32.totalorder %s184, %s185
      %p194 = scmp.eq.s32.totalorder %s29, 0
      %p195 = por %p193, %p194
      %p196 = scmp.ne.s32.totalorder %s184, %s185
      %p197 = scmp.eq.s32.totalorder %s30, 1
      %p198 = por %p196, %p197
      %p200 = scmp.ne.s32.totalorder %s185, %s199
      %p201 = scmp.eq.s32.totalorder %s30, 0
      %p202 = por %p200, %p201
      %s204 = sadd.s32 %s203, 1
      %p207 = scmp.eq.s32.totalorder %s24, 1
      %p208 = scmp.ne.s32.totalorder %s203, %s205
      %p209 = scmp.eq.s32.totalorder %s24, 0
      %p210 = por %p208, %p209
      %p211 = scmp.ne.s32.totalorder %s203, %s205
      %p212 = scmp.eq.s32.totalorder %s29, 1
      %p213 = por %p211, %p212
      %p214 = scmp.ne.s32.totalorder %s205, %s206
      %p215 = scmp.eq.s32.totalorder %s29, 0
      %p216 = por %p214, %p215
      %p217 = scmp.ne.s32.totalorder %s205, %s206
      %p218 = scmp.eq.s32.totalorder %s30, 1
      %p219 = por %p217, %p218
      %p221 = scmp.ne.s32.totalorder %s206, %s220
      %p222 = scmp.eq.s32.totalorder %s30, 0
      %p223 = por %p221, %p222
      %s225 = sadd.s32 %s224, 1
      %p228 = scmp.eq.s32.totalorder %s24, 1
      %p229 = scmp.ne.s32.totalorder %s224, %s226
      %p230 = scmp.eq.s32.totalorder %s24, 0
      %p231 = por %p229, %p230
      %p232 = scmp.ne.s32.totalorder %s224, %s226
      %p233 = scmp.eq.s32.totalorder %s29, 1
      %p234 = por %p232, %p233
      %p235 = scmp.ne.s32.totalorder %s226, %s227
      %p236 = scmp.eq.s32.totalorder %s29, 0
      %p237 = por %p235, %p236
      %p238 = scmp.ne.s32.totalorder %s226, %s227
      %p239 = scmp.eq.s32.totalorder %s30, 1
      %p240 = por %p238, %p239
      %p242 = scmp.ne.s32.totalorder %s227, %s241
      %p243 = scmp.eq.s32.totalorder %s30, 0
      %p244 = por %p242, %p243
      %s245 = ssub.s32 %s31, %s43
      %s246 = ssub.s32 %s32, %s39
      %s247 = sor.u32 %s245, %s246
      %p248 = scmp.eq.s32.totalorder %s247, 0
      %s250 = sadd.s32 %s249, 1
      %s251 = scalar_select %p248, %s249, %s250
      %p254 = pneg %p248
      %p255 = scmp.eq.s32.totalorder %s24, 1
      %p256 = por %p254, %p255
      %p257 = scmp.ne.s32.totalorder %s249, %s252
      %p258 = scmp.eq.s32.totalorder %s24, 0
      %p259 = por %p257, %p258
      %p260 = scmp.ne.s32.totalorder %s249, %s252
      %p261 = scmp.eq.s32.totalorder %s29, 1
      %p262 = por %p260, %p261
      %p263 = scmp.ne.s32.totalorder %s252, %s253
      %p264 = scmp.eq.s32.totalorder %s29, 0
      %p265 = por %p263, %p264
      %p266 = scmp.ne.s32.totalorder %s252, %s253
      %p267 = scmp.eq.s32.totalorder %s30, 1
      %p268 = por %p266, %p267
      %p270 = scmp.ne.s32.totalorder %s253, %s269
      %p271 = scmp.eq.s32.totalorder %s30, 0
      %p272 = por %p270, %p271
      %p273 = scmp.le.s32.totalorder 1, %s24
      %p274 = scmp.lt.s32.totalorder %s24, 3
      %p275 = pnand %p273, %p274
      %p276 = pneg %p275
      // Predicated region
      $region9: #{tpu_custom_call.1} parent=5 // pred_check
        _
      $region10: #{tpu_custom_call.1} parent=5 // pred_check_branch
        %278 = sbr.rel (%p275) target = $region12
      $region11: #{tpu_custom_call.1} parent=5 // pred_region
        %s279 = ssub.s32 %s24, 1
        // Predicated region
        $region13: #{tpu_custom_call.1} parent=11 // pred_check
          %p280 = pneg %p111
        $region14: #{tpu_custom_call.1} parent=11 // pred_check_branch
          %282 = sbr.rel (%p280) target = $region16
        $region15: #{tpu_custom_call.1} parent=11 // pred_region
          _
        $region16: #{tpu_custom_call.1} parent=11 // pred_fallthru
          _
        // Predicated region
        $region17: #{tpu_custom_call.1} parent=11 // pred_check
          %p283 = pneg %p132
        $region18: #{tpu_custom_call.1} parent=11 // pred_check_branch
          %285 = sbr.rel (%p283) target = $region20
        $region19: #{tpu_custom_call.1} parent=11 // pred_region
          _
        $region20: #{tpu_custom_call.1} parent=11 // pred_fallthru
          _
        // Predicated region
        $region21: #{tpu_custom_call.1} parent=11 // pred_check
          %p286 = pneg %p153
        $region22: #{tpu_custom_call.1} parent=11 // pred_check_branch
          %288 = sbr.rel (%p286) target = $region24
        $region23: #{tpu_custom_call.1} parent=11 // pred_region
          _
        $region24: #{tpu_custom_call.1} parent=11 // pred_fallthru
          _
        // Predicated region
        $region25: #{tpu_custom_call.1} parent=11 // pred_check
          %p289 = pneg %p174
        $region26: #{tpu_custom_call.1} parent=11 // pred_check_branch
          %291 = sbr.rel (%p289) target = $region28
        $region27: #{tpu_custom_call.1} parent=11 // pred_region
          _
        $region28: #{tpu_custom_call.1} parent=11 // pred_fallthru
          _
        // Predicated region
        $region29: #{tpu_custom_call.1} parent=11 // pred_check
          %p292 = pneg %p195
        $region30: #{tpu_custom_call.1} parent=11 // pred_check_branch
          %294 = sbr.rel (%p292) target = $region32
        $region31: #{tpu_custom_call.1} parent=11 // pred_region
          _
        $region32: #{tpu_custom_call.1} parent=11 // pred_fallthru
          _
        // Predicated region
        $region33: #{tpu_custom_call.1} parent=11 // pred_check
          %p295 = pneg %p216
        $region34: #{tpu_custom_call.1} parent=11 // pred_check_branch
          %297 = sbr.rel (%p295) target = $region36
        $region35: #{tpu_custom_call.1} parent=11 // pred_region
          _
        $region36: #{tpu_custom_call.1} parent=11 // pred_fallthru
          _
        // Predicated region
        $region37: #{tpu_custom_call.1} parent=11 // pred_check
          %p298 = pneg %p237
        $region38: #{tpu_custom_call.1} parent=11 // pred_check_branch
          %300 = sbr.rel (%p298) target = $region40
        $region39: #{tpu_custom_call.1} parent=11 // pred_region
          _
        $region40: #{tpu_custom_call.1} parent=11 // pred_fallthru
          _
      $region12: #{tpu_custom_call.1} parent=5 // pred_fallthru
        _
      %p301 = scmp.lt.s32.totalorder %s24, 2
      // Predicated region
      $region41: #{tpu_custom_call.1} parent=5 // pred_check
        %p302 = pneg %p301
      $region42: #{tpu_custom_call.1} parent=5 // pred_check_branch
        %304 = sbr.rel (%p302) target = $region44
      $region43: #{tpu_custom_call.1} parent=5 // pred_region
        // Predicated region
        $region45: #{tpu_custom_call.1} parent=43 // pred_check
          %p305 = pneg %p58
        $region46: #{tpu_custom_call.1} parent=43 // pred_check_branch
          %307 = sbr.rel (%p305) target = $region48
        $region47: #{tpu_custom_call.1} parent=43 // pred_region
          %s308 = sand.u32 %s48, 1
          %s309 = scalar_lea.sflag [#allocation5], %s308
          %s310 = sand.u32 %s48, 1
          %s311 = smul.addr %s310, 16
          %s312 = scalar_lea.vmem [#allocation4], %s311
          %s313 = smul.u32 2, %s32
          %315 = vsyncadd %s309, 0
          %s316 = smul.addr %s31, 2
          %s317 = sadd.s32 %s313, %s316
          %s318 = smul.addr %s317, 8
          %s319 = scalar_lea.hbm %s0, %s318
          %s320 = sshll.u32 %s319, 4
          %s321 = int_to_ptr.hbm [resolvable:$true] %s320
          %s322 = sshll.u32 %s312, 4
          %s323 = int_to_ptr.vmem [resolvable:$true] %s322
          %328 = dma.hbm_to_vmem [thread:$0]  %s321, 256, %s323, %s309, 128, 128, 8
        $region48: #{tpu_custom_call.1} parent=43 // pred_fallthru
          _
        // Predicated region
        $region49: #{tpu_custom_call.1} parent=43 // pred_check
          %p329 = pneg %p84
        $region50: #{tpu_custom_call.1} parent=43 // pred_check_branch
          %331 = sbr.rel (%p329) target = $region52
        $region51: #{tpu_custom_call.1} parent=43 // pred_region
          %s332 = sand.u32 %s74, 1
          %s333 = scalar_lea.sflag [#allocation8], %s332
          %s334 = sand.u32 %s74, 1
          %s335 = smul.addr %s334, 128
          %s336 = scalar_lea.vmem [#allocation7], %s335
          %338 = vsyncadd %s333, 0
          %s339 = smul.addr %s31, 16
          %s340 = smul.addr %s339, 8
          %s341 = scalar_lea.hbm %s1, %s340
          %s342 = sshll.u32 %s341, 4
          %s343 = int_to_ptr.hbm [resolvable:$true] %s342
          %s344 = sshll.u32 %s336, 4
          %s345 = int_to_ptr.vmem [resolvable:$true] %s344
          %350 = dma.hbm_to_vmem [thread:$0]  %s343, 2048, %s345, %s333, 128, 128, 8
        $region52: #{tpu_custom_call.1} parent=43 // pred_fallthru
          _
      $region44: #{tpu_custom_call.1} parent=5 // pred_fallthru
        _
      %p351 = scmp.le.s32.totalorder 1, %s24
      %p352 = scmp.lt.s32.totalorder %s24, 3
      %p353 = pnand %p351, %p352
      %p354 = pneg %p353
      // Predicated region
      $region53: #{tpu_custom_call.1} parent=5 // pred_check
        _
      $region54: #{tpu_custom_call.1} parent=5 // pred_check_branch
        %356 = sbr.rel (%p353) target = $region56
      $region55: #{tpu_custom_call.1} parent=5 // pred_region
        %s357 = ssub.s32 %s24, 1
        %s358 = sand.u32 %s51, 1
        %s359 = scalar_lea.sflag [#allocation5], %s358
        %s360 = sand.u32 %s51, 1
        %s361 = smul.addr %s360, 16
        %s362 = scalar_lea.vmem [#allocation4], %s361
        // Predicated region
        $region57: #{tpu_custom_call.1} parent=55 // pred_check
          %p363 = pneg %p64
        $region58: #{tpu_custom_call.1} parent=55 // pred_check_branch
          %365 = sbr.rel (%p363) target = $region60
        $region59: #{tpu_custom_call.1} parent=55 // pred_region
          %367 = dma.done %s359, 256
        $region60: #{tpu_custom_call.1} parent=55 // pred_fallthru
          _
        %s368 = sand.u32 %s77, 1
        %s369 = scalar_lea.sflag [#allocation8], %s368
        %s370 = sand.u32 %s77, 1
        %s371 = smul.addr %s370, 128
        %s372 = scalar_lea.vmem [#allocation7], %s371
        // Predicated region
        $region61: #{tpu_custom_call.1} parent=55 // pred_check
          %p373 = pneg %p90
        $region62: #{tpu_custom_call.1} parent=55 // pred_check_branch
          %375 = sbr.rel (%p373) target = $region64
        $region63: #{tpu_custom_call.1} parent=55 // pred_region
          %377 = dma.done %s369, 2048
        $region64: #{tpu_custom_call.1} parent=55 // pred_fallthru
          _
        %s378 = sand.u32 %s51, 1
        %s379 = scalar_lea.sflag [#allocation5], %s378
        %s380 = sand.u32 %s51, 1
        %s381 = smul.addr %s380, 16
        %s382 = scalar_lea.vmem [#allocation4], %s381
        %p383 = pneg %p64
        %p384 = pneg %p61
        %s385 = sand.u32 %s77, 1
        %s386 = scalar_lea.sflag [#allocation8], %s385
        %s387 = sand.u32 %s77, 1
        %s388 = smul.addr %s387, 128
        %s389 = scalar_lea.vmem [#allocation7], %s388
        %p390 = pneg %p90
        %p391 = pneg %p87
        %p392 = pneg %p111
        %p393 = pneg %p108
        %p394 = pneg %p132
        %p395 = pneg %p129
        %p396 = pneg %p153
        %p397 = pneg %p150
        %p398 = pneg %p174
        %p399 = pneg %p171
        %p400 = pneg %p195
        %p401 = pneg %p192
        %p402 = pneg %p216
        %p403 = pneg %p213
        %p404 = pneg %p237
        %p405 = pneg %p234
        %p406 = pneg %p265
        %p407 = pneg %p262
        %s408 = sand.u32 %s252, 1
        %s409 = scalar_lea.sflag [#allocation6], %s408
        %s410 = sand.u32 %s252, 1
        %s411 = smul.addr %s410, 16
        %s412 = scalar_lea.vmem [#allocation9], %s411
        %s413 = smul.u32 2, %s34
        %s414 = smul.u32 2, %s34
        %p415 = scmp.eq.s32.totalorder %s34, 0
        // Predicated region
        $region65: #{tpu_custom_call.1} parent=55 // pred_check
          %p416 = pneg %p415
        $region66: #{tpu_custom_call.1} parent=55 // pred_check_branch
          %418 = sbr.rel (%p416) target = $region68
        $region67: #{tpu_custom_call.1} parent=55 // pred_region
          %v419 = vld [vmem:[%s372] sm:$0xff]
          %v420 = vld [vmem:[%s372 + $0x8] sm:$0xff]
          %v421 = vld [vmem:[%s372 + $0x10] sm:$0xff]
          %v422 = vld [vmem:[%s372 + $0x18] sm:$0xff]
          %v423 = vld [vmem:[%s372 + $0x20] sm:$0xff]
          %v424 = vld [vmem:[%s372 + $0x28] sm:$0xff]
          %v425 = vld [vmem:[%s372 + $0x30] sm:$0xff]
          %v426 = vld [vmem:[%s372 + $0x38] sm:$0xff]
          %v427 = vld [vmem:[%s372 + $0x40] sm:$0xff]
          %v428 = vld [vmem:[%s372 + $0x48] sm:$0xff]
          %v429 = vld [vmem:[%s372 + $0x50] sm:$0xff]
          %v430 = vld [vmem:[%s372 + $0x58] sm:$0xff]
          %v431 = vld [vmem:[%s372 + $0x60] sm:$0xff]
          %v432 = vld [vmem:[%s372 + $0x68] sm:$0xff]
          %v433 = vld [vmem:[%s372 + $0x70] sm:$0xff]
          %v434 = vld [vmem:[%s372 + $0x78] sm:$0xff]
          %v435 = vld [vmem:[%s5] sm:$0xff]
          %v436 = vld [vmem:[%s5 + $0x8] sm:$0xff]
          %v437 = vld [vmem:[%s5 + $0x10] sm:$0xff]
          %v438 = vld [vmem:[%s5 + $0x18] sm:$0xff]
          %v439 = vld [vmem:[%s5 + $0x20] sm:$0xff]
          %v440 = vld [vmem:[%s5 + $0x28] sm:$0xff]
          %v441 = vld [vmem:[%s5 + $0x30] sm:$0xff]
          %v442 = vld [vmem:[%s5 + $0x38] sm:$0xff]
          %v443 = vld [vmem:[%s5 + $0x40] sm:$0xff]
          %v444 = vld [vmem:[%s5 + $0x48] sm:$0xff]
          %v445 = vld [vmem:[%s5 + $0x50] sm:$0xff]
          %v446 = vld [vmem:[%s5 + $0x58] sm:$0xff]
          %v447 = vld [vmem:[%s5 + $0x60] sm:$0xff]
          %v448 = vld [vmem:[%s5 + $0x68] sm:$0xff]
          %v449 = vld [vmem:[%s5 + $0x70] sm:$0xff]
          %v450 = vld [vmem:[%s5 + $0x78] sm:$0xff]
          %451 = vmatpush.msra.mxu0 %v450
          %452 = vmatpush.msra.mxu0 %v449
          %453 = vmatpush.msra.mxu0 %v448
          %454 = vmatpush.msra.mxu0 %v447
          %455 = vmatpush.msra.mxu0 %v446
          %456 = vmatpush.msra.mxu0 %v445
          %457 = vmatpush.msra.mxu0 %v444
          %458 = vmatpush.msra.mxu0 %v443
          %459 = vmatpush.msra.mxu0 %v442
          %460 = vmatpush.msra.mxu0 %v441
          %461 = vmatpush.msra.mxu0 %v440
          %462 = vmatpush.msra.mxu0 %v439
          %463 = vmatpush.msra.mxu0 %v438
          %464 = vmatpush.msra.mxu0 %v437
          %465 = vmatpush.msra.mxu0 %v436
          %466 = vmatpush.msra.mxu0 %v435
          %467 = vmatmul.f32.gmra.mxu0 %v419
          %v468 = vpop.f32.mrf.mxu0
          %v469 = vadd.f32 0.0, %v468
          %470 = vmatmul.f32.gmra.mxu0 %v420
          %v471 = vpop.f32.mrf.mxu0
          %v472 = vadd.f32 0.0, %v471
          %473 = vmatmul.f32.gmra.mxu0 %v421
          %v474 = vpop.f32.mrf.mxu0
          %v475 = vadd.f32 0.0, %v474
          %476 = vmatmul.f32.gmra.mxu0 %v422
          %v477 = vpop.f32.mrf.mxu0
          %v478 = vadd.f32 0.0, %v477
          %479 = vmatmul.f32.gmra.mxu0 %v423
          %v480 = vpop.f32.mrf.mxu0
          %v481 = vadd.f32 0.0, %v480
          %482 = vmatmul.f32.gmra.mxu0 %v424
          %v483 = vpop.f32.mrf.mxu0
          %v484 = vadd.f32 0.0, %v483
          %485 = vmatmul.f32.gmra.mxu0 %v425
          %v486 = vpop.f32.mrf.mxu0
          %v487 = vadd.f32 0.0, %v486
          %488 = vmatmul.f32.gmra.mxu0 %v426
          %v489 = vpop.f32.mrf.mxu0
          %v490 = vadd.f32 0.0, %v489
          %491 = vmatmul.f32.gmra.mxu0 %v427
          %v492 = vpop.f32.mrf.mxu0
          %v493 = vadd.f32 0.0, %v492
          %494 = vmatmul.f32.gmra.mxu0 %v428
          %v495 = vpop.f32.mrf.mxu0
          %v496 = vadd.f32 0.0, %v495
          %497 = vmatmul.f32.gmra.mxu0 %v429
          %v498 = vpop.f32.mrf.mxu0
          %v499 = vadd.f32 0.0, %v498
          %500 = vmatmul.f32.gmra.mxu0 %v430
          %v501 = vpop.f32.mrf.mxu0
          %v502 = vadd.f32 0.0, %v501
          %503 = vmatmul.f32.gmra.mxu0 %v431
          %v504 = vpop.f32.mrf.mxu0
          %v505 = vadd.f32 0.0, %v504
          %506 = vmatmul.f32.gmra.mxu0 %v432
          %v507 = vpop.f32.mrf.mxu0
          %v508 = vadd.f32 0.0, %v507
          %509 = vmatmul.f32.gmra.mxu0 %v433
          %v510 = vpop.f32.mrf.mxu0
          %v511 = vadd.f32 0.0, %v510
          %512 = vmatmul.f32.gmra.mxu0 %v434
          %v513 = vpop.f32.mrf.mxu0
          %v514 = vadd.f32 0.0, %v513
          %515 = vdwg.mxu0
          %516 = vst [vmem:[#allocation2] sm:$0xff] %v469
          %517 = vst [vmem:[#allocation2 + $0x8] sm:$0xff] %v472
          %518 = vst [vmem:[#allocation2 + $0x10] sm:$0xff] %v475
          %519 = vst [vmem:[#allocation2 + $0x18] sm:$0xff] %v478
          %520 = vst [vmem:[#allocation2 + $0x20] sm:$0xff] %v481
          %521 = vst [vmem:[#allocation2 + $0x28] sm:$0xff] %v484
          %522 = vst [vmem:[#allocation2 + $0x30] sm:$0xff] %v487
          %523 = vst [vmem:[#allocation2 + $0x38] sm:$0xff] %v490
          %524 = vst [vmem:[#allocation2 + $0x40] sm:$0xff] %v493
          %525 = vst [vmem:[#allocation2 + $0x48] sm:$0xff] %v496
          %526 = vst [vmem:[#allocation2 + $0x50] sm:$0xff] %v499
          %527 = vst [vmem:[#allocation2 + $0x58] sm:$0xff] %v502
          %528 = vst [vmem:[#allocation2 + $0x60] sm:$0xff] %v505
          %529 = vst [vmem:[#allocation2 + $0x68] sm:$0xff] %v508
          %530 = vst [vmem:[#allocation2 + $0x70] sm:$0xff] %v511
          %531 = vst [vmem:[#allocation2 + $0x78] sm:$0xff] %v514
          %v532 = vld [vmem:[%s3] sm:$0x1]
          %533 = vst [vmem:[#allocation2] sm:$0x1] %v532
        $region68: #{tpu_custom_call.1} parent=55 // pred_fallthru
          _
        %v534 = vld [vmem:[%s362] sm:$0xff]
        %v535 = vld [vmem:[%s362 + $0x8] sm:$0xff]
        %v536 = vlaneseq
        %v537 = vand.u32 %v536, 127
        %vm538 = vcmp.lt.s32.totalorder %v537, 32
        %v539 = vsel %vm538, 1, 0
        %v540 = vcvt.s32.f32 %v539
        %541 = vadd.xlane.f32.xlu0 %v534
        %v542 = vpop.xlane.xlu0 %541
        %543 = vadd.xlane.f32.xlu0 %v535
        %v544 = vpop.xlane.xlu0 %543
        %v545 = vmul.f32 %v542, 0.03125
        %v546 = vmul.f32 %v544, 0.03125
        %v547 = vsub.f32 %v534, %v545
        %v548 = vsub.f32 %v535, %v546
        %v549 = vmul.f32 %v547, %v540
        %v550 = vmul.f32 %v548, %v540
        %v551 = vmul.f32 %v549, %v549
        %v552 = vmul.f32 %v550, %v550
        %553 = vadd.xlane.f32.xlu0 %v551
        %v554 = vpop.xlane.xlu0 %553
        %555 = vadd.xlane.f32.xlu0 %v552
        %v556 = vpop.xlane.xlu0 %555
        %v557 = vmul.f32 %v554, 0.03125
        %v558 = vmul.f32 %v556, 0.03125
        %v559 = vadd.f32 %v557, 1e-05
        %v560 = vadd.f32 %v558, 1e-05
        %v561 = vrsqrt.pop %v559
        %v562 = vmul.f32 %v561, %v559
        %v563 = vmul.f32 %v562, %v561
        %v564 = vmul.f32 0.5, %v563
        %v565 = vsub.f32 1.5, %v564
        %v566 = vmul.f32 %v561, %v565
        %vm567 = vweird.f32 %v559
        %vm568 = vweird.f32 %v561
        %vm569 = vmor %vm567, %vm568
        %v570 = vsel %vm569, %v561, %v566
        %v571 = vrsqrt.pop %v560
        %v572 = vmul.f32 %v571, %v560
        %v573 = vmul.f32 %v572, %v571
        %v574 = vmul.f32 0.5, %v573
        %v575 = vsub.f32 1.5, %v574
        %v576 = vmul.f32 %v571, %v575
        %vm577 = vweird.f32 %v560
        %vm578 = vweird.f32 %v571
        %vm579 = vmor %vm577, %vm578
        %v580 = vsel %vm579, %v571, %v576
        %v581 = vmul.f32 %v549, %v570
        %v582 = vmul.f32 %v550, %v580
        %v583 = vld [vmem:[%s7] sm:$0x1]
        %v585 = vperm.slane %v583, 0
        %v587 = vmul.f32 %v581, %v585
        %v588 = vmul.f32 %v582, %v585
        %v589 = vld [vmem:[%s4] sm:$0xff]
        %v590 = vld [vmem:[%s4 + $0x8] sm:$0xff]
        %v591 = vld [vmem:[%s4 + $0x10] sm:$0xff]
        %v592 = vld [vmem:[%s4 + $0x18] sm:$0xff]
        %v593 = vld [vmem:[%s4 + $0x20] sm:$0xff]
        %v594 = vld [vmem:[%s4 + $0x28] sm:$0xff]
        %v595 = vld [vmem:[%s4 + $0x30] sm:$0xff]
        %v596 = vld [vmem:[%s4 + $0x38] sm:$0xff]
        %v597 = vld [vmem:[%s4 + $0x40] sm:$0xff]
        %v598 = vld [vmem:[%s4 + $0x48] sm:$0xff]
        %v599 = vld [vmem:[%s4 + $0x50] sm:$0xff]
        %v600 = vld [vmem:[%s4 + $0x58] sm:$0xff]
        %v601 = vld [vmem:[%s4 + $0x60] sm:$0xff]
        %v602 = vld [vmem:[%s4 + $0x68] sm:$0xff]
        %v603 = vld [vmem:[%s4 + $0x70] sm:$0xff]
        %v604 = vld [vmem:[%s4 + $0x78] sm:$0xff]
        %605 = vmatpush.msra.mxu0 %v604
        %606 = vmatpush.msra.mxu0 %v603
        %607 = vmatpush.msra.mxu0 %v602
        %608 = vmatpush.msra.mxu0 %v601
        %609 = vmatpush.msra.mxu0 %v600
        %610 = vmatpush.msra.mxu0 %v599
        %611 = vmatpush.msra.mxu0 %v598
        %612 = vmatpush.msra.mxu0 %v597
        %613 = vmatpush.msra.mxu0 %v596
        %614 = vmatpush.msra.mxu0 %v595
        %615 = vmatpush.msra.mxu0 %v594
        %616 = vmatpush.msra.mxu0 %v593
        %617 = vmatpush.msra.mxu0 %v592
        %618 = vmatpush.msra.mxu0 %v591
        %619 = vmatpush.msra.mxu0 %v590
        %620 = vmatpush.msra.mxu0 %v589
        %621 = vmatmul.f32.gmra.mxu0 %v587
        %v622 = vpop.f32.mrf.mxu0
        %v623 = vadd.f32 0.0, %v622
        %624 = vmatmul.f32.gmra.mxu0 %v588
        %v625 = vpop.f32.mrf.mxu0
        %v626 = vadd.f32 0.0, %v625
        %627 = vdwg.mxu0
        %v628 = vld [vmem:[%s2] sm:$0x1]
        %v629 = vld [vmem:[#allocation2] sm:$0xff]
        %v630 = vld [vmem:[#allocation2 + $0x8] sm:$0xff]
        %v631 = vld [vmem:[#allocation2 + $0x10] sm:$0xff]
        %v632 = vld [vmem:[#allocation2 + $0x18] sm:$0xff]
        %v633 = vld [vmem:[#allocation2 + $0x20] sm:$0xff]
        %v634 = vld [vmem:[#allocation2 + $0x28] sm:$0xff]
        %v635 = vld [vmem:[#allocation2 + $0x30] sm:$0xff]
        %v636 = vld [vmem:[#allocation2 + $0x38] sm:$0xff]
        %v637 = vld [vmem:[#allocation2 + $0x40] sm:$0xff]
        %v638 = vld [vmem:[#allocation2 + $0x48] sm:$0xff]
        %v639 = vld [vmem:[#allocation2 + $0x50] sm:$0xff]
        %v640 = vld [vmem:[#allocation2 + $0x58] sm:$0xff]
        %v641 = vld [vmem:[#allocation2 + $0x60] sm:$0xff]
        %v642 = vld [vmem:[#allocation2 + $0x68] sm:$0xff]
        %v643 = vld [vmem:[#allocation2 + $0x70] sm:$0xff]
        %v644 = vld [vmem:[#allocation2 + $0x78] sm:$0xff]
        %v646 = vperm.slane %v628, 0
        %vm648 = vcmask 130048
        %v650 = vsel %vm648, %v623, 0
        %v653 = vsel %vm648, %v626, 0
        %v656 = vsel %vm648, %v629, 0
        %v659 = vsel %vm648, %v630, 0
        %v662 = vsel %vm648, %v631, 0
        %v665 = vsel %vm648, %v632, 0
        %v668 = vsel %vm648, %v633, 0
        %v671 = vsel %vm648, %v634, 0
        %v674 = vsel %vm648, %v635, 0
        %v677 = vsel %vm648, %v636, 0
        %v680 = vsel %vm648, %v637, 0
        %v683 = vsel %vm648, %v638, 0
        %v686 = vsel %vm648, %v639, 0
        %v689 = vsel %vm648, %v640, 0
        %v692 = vsel %vm648, %v641, 0
        %v695 = vsel %vm648, %v642, 0
        %v698 = vsel %vm648, %v643, 0
        %v701 = vsel %vm648, %v644, 0
        %703 = vmatpush.xpose.msra.mxu0 %v701
        %704 = vmatpush.xpose.msra.mxu0 %v698
        %705 = vmatpush.xpose.msra.mxu0 %v695
        %706 = vmatpush.xpose.msra.mxu0 %v692
        %707 = vmatpush.xpose.msra.mxu0 %v689
        %708 = vmatpush.xpose.msra.mxu0 %v686
        %709 = vmatpush.xpose.msra.mxu0 %v683
        %710 = vmatpush.xpose.msra.mxu0 %v680
        %711 = vmatpush.xpose.msra.mxu0 %v677
        %712 = vmatpush.xpose.msra.mxu0 %v674
        %713 = vmatpush.xpose.msra.mxu0 %v671
        %714 = vmatpush.xpose.msra.mxu0 %v668
        %715 = vmatpush.xpose.msra.mxu0 %v665
        %716 = vmatpush.xpose.msra.mxu0 %v662
        %717 = vmatpush.xpose.msra.mxu0 %v659
        %718 = vmatpush.xpose.msra.mxu0 %v656
        %719 = vmatmul.f32.gmra.mxu0 %v650
        %v720 = vpop.f32.mrf.mxu0
        %v721 = vadd.f32 %v646, %v720
        %722 = vmatmul.f32.gmra.mxu0 %v653
        %v723 = vpop.f32.mrf.mxu0
        %v724 = vadd.f32 %v646, %v723
        %725 = vdwg.mxu0
        %726 = vmax.xlane.f32.xlu0 %v721
        %v727 = vpop.xlane.xlu0 %726
        %728 = vmax.xlane.f32.xlu0 %v724
        %v729 = vpop.xlane.xlu0 %728
        %v730 = vsub.f32 %v721, %v727
        %v731 = vsub.f32 %v724, %v729
        %v732 = vmul.f32 %v730, 1.442695
        %v733 = vpow.pop %v732
        %v734 = vmul.f32 %v731, 1.442695
        %v735 = vpow.pop %v734
        %736 = vadd.xlane.f32.xlu0 %v733
        %v737 = vpop.xlane.xlu0 %736
        %738 = vadd.xlane.f32.xlu0 %v735
        %v739 = vpop.xlane.xlu0 %738
        %v740 = vrcp.pop %v737
        %v741 = vmul.f32 %v737, %v740
        %v742 = vsub.f32 1.0, %v741
        %v743 = vmul.f32 %v740, %v742
        %v744 = vadd.f32 %v740, %v743
        %vm745 = vweird.f32 %v737
        %vm746 = vweird.f32 %v740
        %vm747 = vmor %vm745, %vm746
        %v748 = vsel %vm747, %v740, %v744
        %v749 = vand.u32 2147483647, %v737
        %vm750 = vcmp.eq.f32.partialorder %v749, 8.507059e+37
        %v751 = vand.u32 %v737, 2147483648
        %v752 = vor.u32 1.1754944e-38, %v751
        %v753 = vsel %vm750, %v752, %v748
        %v754 = vrcp.pop %v739
        %v755 = vmul.f32 %v739, %v754
        %v756 = vsub.f32 1.0, %v755
        %v757 = vmul.f32 %v754, %v756
        %v758 = vadd.f32 %v754, %v757
        %vm759 = vweird.f32 %v739
        %vm760 = vweird.f32 %v754
        %vm761 = vmor %vm759, %vm760
        %v762 = vsel %vm761, %v754, %v758
        %v763 = vand.u32 2147483647, %v739
        %vm764 = vcmp.eq.f32.partialorder %v763, 8.507059e+37
        %v765 = vand.u32 %v739, 2147483648
        %v766 = vor.u32 1.1754944e-38, %v765
        %v767 = vsel %vm764, %v766, %v762
        %768 = vrot.lane.b32.xlu0 %v629, 64
        %v769 = vpop.permute.xlu0 %768
        %770 = vrot.lane.b32.xlu0 %v630, 64
        %v771 = vpop.permute.xlu0 %770
        %772 = vrot.lane.b32.xlu0 %v631, 64
        %v773 = vpop.permute.xlu0 %772
        %774 = vrot.lane.b32.xlu0 %v632, 64
        %v775 = vpop.permute.xlu0 %774
        %776 = vrot.lane.b32.xlu0 %v633, 64
        %v777 = vpop.permute.xlu0 %776
        %778 = vrot.lane.b32.xlu0 %v634, 64
        %v779 = vpop.permute.xlu0 %778
        %780 = vrot.lane.b32.xlu0 %v635, 64
        %v781 = vpop.permute.xlu0 %780
        %782 = vrot.lane.b32.xlu0 %v636, 64
        %v783 = vpop.permute.xlu0 %782
        %784 = vrot.lane.b32.xlu0 %v637, 64
        %v785 = vpop.permute.xlu0 %784
        %786 = vrot.lane.b32.xlu0 %v638, 64
        %v787 = vpop.permute.xlu0 %786
        %788 = vrot.lane.b32.xlu0 %v639, 64
        %v789 = vpop.permute.xlu0 %788
        %790 = vrot.lane.b32.xlu0 %v640, 64
        %v791 = vpop.permute.xlu0 %790
        %792 = vrot.lane.b32.xlu0 %v641, 64
        %v793 = vpop.permute.xlu0 %792
        %794 = vrot.lane.b32.xlu0 %v642, 64
        %v795 = vpop.permute.xlu0 %794
        %796 = vrot.lane.b32.xlu0 %v643, 64
        %v797 = vpop.permute.xlu0 %796
        %798 = vrot.lane.b32.xlu0 %v644, 64
        %v799 = vpop.permute.xlu0 %798
        %816 = vmatpush.msra.mxu0 %v799
        %817 = vmatpush.msra.mxu0 %v797
        %818 = vmatpush.msra.mxu0 %v795
        %819 = vmatpush.msra.mxu0 %v793
        %820 = vmatpush.msra.mxu0 %v791
        %821 = vmatpush.msra.mxu0 %v789
        %822 = vmatpush.msra.mxu0 %v787
        %823 = vmatpush.msra.mxu0 %v785
        %824 = vmatpush.msra.mxu0 %v783
        %825 = vmatpush.msra.mxu0 %v781
        %826 = vmatpush.msra.mxu0 %v779
        %827 = vmatpush.msra.mxu0 %v777
        %828 = vmatpush.msra.mxu0 %v775
        %829 = vmatpush.msra.mxu0 %v773
        %830 = vmatpush.msra.mxu0 %v771
        %831 = vmatpush.msra.mxu0 %v769
        %832 = vmatmul.f32.gmra.mxu0 %v733
        %v833 = vpop.f32.mrf.mxu0
        %v834 = vadd.f32 0.0, %v833
        %835 = vmatmul.f32.gmra.mxu0 %v735
        %v836 = vpop.f32.mrf.mxu0
        %v837 = vadd.f32 0.0, %v836
        %838 = vdwg.mxu0
        %v839 = vmul.f32 %v834, %v753
        %v840 = vmul.f32 %v837, %v767
        %841 = vst.msk [vmem:[#allocation3] sm:$0xff] %vm648, %v839
        %842 = vst.msk [vmem:[#allocation3 + $0x8] sm:$0xff] %vm648, %v840
        %v843 = vld [vmem:[#allocation2] sm:$0xff]
        %v844 = vld [vmem:[#allocation2 + $0x8] sm:$0xff]
        %v845 = vld [vmem:[#allocation2 + $0x10] sm:$0xff]
        %v846 = vld [vmem:[#allocation2 + $0x18] sm:$0xff]
        %v847 = vld [vmem:[#allocation2 + $0x20] sm:$0xff]
        %v848 = vld [vmem:[#allocation2 + $0x28] sm:$0xff]
        %v849 = vld [vmem:[#allocation2 + $0x30] sm:$0xff]
        %v850 = vld [vmem:[#allocation2 + $0x38] sm:$0xff]
        %v851 = vld [vmem:[#allocation2 + $0x40] sm:$0xff]
        %v852 = vld [vmem:[#allocation2 + $0x48] sm:$0xff]
        %v853 = vld [vmem:[#allocation2 + $0x50] sm:$0xff]
        %v854 = vld [vmem:[#allocation2 + $0x58] sm:$0xff]
        %v855 = vld [vmem:[#allocation2 + $0x60] sm:$0xff]
        %v856 = vld [vmem:[#allocation2 + $0x68] sm:$0xff]
        %v857 = vld [vmem:[#allocation2 + $0x70] sm:$0xff]
        %v858 = vld [vmem:[#allocation2 + $0x78] sm:$0xff]
        %859 = vrot.lane.b32.xlu0 %v623, 112
        %v860 = vpop.permute.xlu0 %859
        %861 = vrot.lane.b32.xlu0 %v626, 112
        %v862 = vpop.permute.xlu0 %861
        %879 = vrot.lane.b32.xlu0 %v843, 112
        %v880 = vpop.permute.xlu0 %879
        %881 = vrot.lane.b32.xlu0 %v844, 112
        %v882 = vpop.permute.xlu0 %881
        %883 = vrot.lane.b32.xlu0 %v845, 112
        %v884 = vpop.permute.xlu0 %883
        %885 = vrot.lane.b32.xlu0 %v846, 112
        %v886 = vpop.permute.xlu0 %885
        %887 = vrot.lane.b32.xlu0 %v847, 112
        %v888 = vpop.permute.xlu0 %887
        %889 = vrot.lane.b32.xlu0 %v848, 112
        %v890 = vpop.permute.xlu0 %889
        %891 = vrot.lane.b32.xlu0 %v849, 112
        %v892 = vpop.permute.xlu0 %891
        %893 = vrot.lane.b32.xlu0 %v850, 112
        %v894 = vpop.permute.xlu0 %893
        %895 = vrot.lane.b32.xlu0 %v851, 112
        %v896 = vpop.permute.xlu0 %895
        %897 = vrot.lane.b32.xlu0 %v852, 112
        %v898 = vpop.permute.xlu0 %897
        %899 = vrot.lane.b32.xlu0 %v853, 112
        %v900 = vpop.permute.xlu0 %899
        %901 = vrot.lane.b32.xlu0 %v854, 112
        %v902 = vpop.permute.xlu0 %901
        %903 = vrot.lane.b32.xlu0 %v855, 112
        %v904 = vpop.permute.xlu0 %903
        %905 = vrot.lane.b32.xlu0 %v856, 112
        %v906 = vpop.permute.xlu0 %905
        %907 = vrot.lane.b32.xlu0 %v857, 112
        %v908 = vpop.permute.xlu0 %907
        %909 = vrot.lane.b32.xlu0 %v858, 112
        %v910 = vpop.permute.xlu0 %909
        %v911 = vsel %vm648, %v860, 0
        %v913 = vsel %vm648, %v862, 0
        %v915 = vsel %vm648, %v880, 0
        %v917 = vsel %vm648, %v882, 0
        %v919 = vsel %vm648, %v884, 0
        %v921 = vsel %vm648, %v886, 0
        %v923 = vsel %vm648, %v888, 0
        %v925 = vsel %vm648, %v890, 0
        %v927 = vsel %vm648, %v892, 0
        %v929 = vsel %vm648, %v894, 0
        %v931 = vsel %vm648, %v896, 0
        %v933 = vsel %vm648, %v898, 0
        %v935 = vsel %vm648, %v900, 0
        %v937 = vsel %vm648, %v902, 0
        %v939 = vsel %vm648, %v904, 0
        %v941 = vsel %vm648, %v906, 0
        %v943 = vsel %vm648, %v908, 0
        %v945 = vsel %vm648, %v910, 0
        %947 = vmatpush.xpose.msra.mxu0 %v945
        %948 = vmatpush.xpose.msra.mxu0 %v943
        %949 = vmatpush.xpose.msra.mxu0 %v941
        %950 = vmatpush.xpose.msra.mxu0 %v939
        %951 = vmatpush.xpose.msra.mxu0 %v937
        %952 = vmatpush.xpose.msra.mxu0 %v935
        %953 = vmatpush.xpose.msra.mxu0 %v933
        %954 = vmatpush.xpose.msra.mxu0 %v931
        %955 = vmatpush.xpose.msra.mxu0 %v929
        %956 = vmatpush.xpose.msra.mxu0 %v927
        %957 = vmatpush.xpose.msra.mxu0 %v925
        %958 = vmatpush.xpose.msra.mxu0 %v923
        %959 = vmatpush.xpose.msra.mxu0 %v921
        %960 = vmatpush.xpose.msra.mxu0 %v919
        %961 = vmatpush.xpose.msra.mxu0 %v917
        %962 = vmatpush.xpose.msra.mxu0 %v915
        %963 = vmatmul.f32.gmra.mxu0 %v911
        %v964 = vpop.f32.mrf.mxu0
        %v965 = vadd.f32 %v646, %v964
        %966 = vmatmul.f32.gmra.mxu0 %v913
        %v967 = vpop.f32.mrf.mxu0
        %v968 = vadd.f32 %v646, %v967
        %969 = vdwg.mxu0
        %970 = vmax.xlane.f32.xlu0 %v965
        %v971 = vpop.xlane.xlu0 %970
        %972 = vmax.xlane.f32.xlu0 %v968
        %v973 = vpop.xlane.xlu0 %972
        %v974 = vsub.f32 %v965, %v971
        %v975 = vsub.f32 %v968, %v973
        %v976 = vmul.f32 %v974, 1.442695
        %v977 = vpow.pop %v976
        %v978 = vmul.f32 %v975, 1.442695
        %v979 = vpow.pop %v978
        %980 = vadd.xlane.f32.xlu0 %v977
        %v981 = vpop.xlane.xlu0 %980
        %982 = vadd.xlane.f32.xlu0 %v979
        %v983 = vpop.xlane.xlu0 %982
        %v984 = vrcp.pop %v981
        %v985 = vmul.f32 %v981, %v984
        %v986 = vsub.f32 1.0, %v985
        %v987 = vmul.f32 %v984, %v986
        %v988 = vadd.f32 %v984, %v987
        %vm989 = vweird.f32 %v981
        %vm990 = vweird.f32 %v984
        %vm991 = vmor %vm989, %vm990
        %v992 = vsel %vm991, %v984, %v988
        %v993 = vand.u32 2147483647, %v981
        %vm994 = vcmp.eq.f32.partialorder %v993, 8.507059e+37
        %v995 = vand.u32 %v981, 2147483648
        %v996 = vor.u32 1.1754944e-38, %v995
        %v997 = vsel %vm994, %v996, %v992
        %v998 = vrcp.pop %v983
        %v999 = vmul.f32 %v983, %v998
        %v1000 = vsub.f32 1.0, %v999
        %v1001 = vmul.f32 %v998, %v1000
        %v1002 = vadd.f32 %v998, %v1001
        %vm1003 = vweird.f32 %v983
        %vm1004 = vweird.f32 %v998
        %vm1005 = vmor %vm1003, %vm1004
        %v1006 = vsel %vm1005, %v998, %v1002
        %v1007 = vand.u32 2147483647, %v983
        %vm1008 = vcmp.eq.f32.partialorder %v1007, 8.507059e+37
        %v1009 = vand.u32 %v983, 2147483648
        %v1010 = vor.u32 1.1754944e-38, %v1009
        %v1011 = vsel %vm1008, %v1010, %v1006
        %1012 = vrot.lane.b32.xlu0 %v843, 48
        %v1013 = vpop.permute.xlu0 %1012
        %1014 = vrot.lane.b32.xlu0 %v844, 48
        %v1015 = vpop.permute.xlu0 %1014
        %1016 = vrot.lane.b32.xlu0 %v845, 48
        %v1017 = vpop.permute.xlu0 %1016
        %1018 = vrot.lane.b32.xlu0 %v846, 48
        %v1019 = vpop.permute.xlu0 %1018
        %1020 = vrot.lane.b32.xlu0 %v847, 48
        %v1021 = vpop.permute.xlu0 %1020
        %1022 = vrot.lane.b32.xlu0 %v848, 48
        %v1023 = vpop.permute.xlu0 %1022
        %1024 = vrot.lane.b32.xlu0 %v849, 48
        %v1025 = vpop.permute.xlu0 %1024
        %1026 = vrot.lane.b32.xlu0 %v850, 48
        %v1027 = vpop.permute.xlu0 %1026
        %1028 = vrot.lane.b32.xlu0 %v851, 48
        %v1029 = vpop.permute.xlu0 %1028
        %1030 = vrot.lane.b32.xlu0 %v852, 48
        %v1031 = vpop.permute.xlu0 %1030
        %1032 = vrot.lane.b32.xlu0 %v853, 48
        %v1033 = vpop.permute.xlu0 %1032
        %1034 = vrot.lane.b32.xlu0 %v854, 48
        %v1035 = vpop.permute.xlu0 %1034
        %1036 = vrot.lane.b32.xlu0 %v855, 48
        %v1037 = vpop.permute.xlu0 %1036
        %1038 = vrot.lane.b32.xlu0 %v856, 48
        %v1039 = vpop.permute.xlu0 %1038
        %1040 = vrot.lane.b32.xlu0 %v857, 48
        %v1041 = vpop.permute.xlu0 %1040
        %1042 = vrot.lane.b32.xlu0 %v858, 48
        %v1043 = vpop.permute.xlu0 %1042
        %1060 = vmatpush.msra.mxu0 %v1043
        %1061 = vmatpush.msra.mxu0 %v1041
        %1062 = vmatpush.msra.mxu0 %v1039
        %1063 = vmatpush.msra.mxu0 %v1037
        %1064 = vmatpush.msra.mxu0 %v1035
        %1065 = vmatpush.msra.mxu0 %v1033
        %1066 = vmatpush.msra.mxu0 %v1031
        %1067 = vmatpush.msra.mxu0 %v1029
        %1068 = vmatpush.msra.mxu0 %v1027
        %1069 = vmatpush.msra.mxu0 %v1025
        %1070 = vmatpush.msra.mxu0 %v1023
        %1071 = vmatpush.msra.mxu0 %v1021
        %1072 = vmatpush.msra.mxu0 %v1019
        %1073 = vmatpush.msra.mxu0 %v1017
        %1074 = vmatpush.msra.mxu0 %v1015
        %1075 = vmatpush.msra.mxu0 %v1013
        %1076 = vmatmul.f32.gmra.mxu0 %v977
        %v1077 = vpop.f32.mrf.mxu0
        %v1078 = vadd.f32 0.0, %v1077
        %1079 = vmatmul.f32.gmra.mxu0 %v979
        %v1080 = vpop.f32.mrf.mxu0
        %v1081 = vadd.f32 0.0, %v1080
        %1082 = vdwg.mxu0
        %v1083 = vmul.f32 %v1078, %v997
        %v1084 = vmul.f32 %v1081, %v1011
        %1087 = vrot.lane.b32.xlu0 %v1083, 16
        %v1088 = vpop.permute.xlu0 %1087
        %1089 = vrot.lane.b32.xlu0 %v1084, 16
        %v1090 = vpop.permute.xlu0 %1089
        %vm1093 = vcmask 261248
        %1094 = vst.msk [vmem:[#allocation3] sm:$0xff] %vm1093, %v1088
        %1095 = vst.msk [vmem:[#allocation3 + $0x8] sm:$0xff] %vm1093, %v1090
        %v1096 = vld [vmem:[#allocation2] sm:$0xff]
        %v1097 = vld [vmem:[#allocation2 + $0x8] sm:$0xff]
        %v1098 = vld [vmem:[#allocation2 + $0x10] sm:$0xff]
        %v1099 = vld [vmem:[#allocation2 + $0x18] sm:$0xff]
        %v1100 = vld [vmem:[#allocation2 + $0x20] sm:$0xff]
        %v1101 = vld [vmem:[#allocation2 + $0x28] sm:$0xff]
        %v1102 = vld [vmem:[#allocation2 + $0x30] sm:$0xff]
        %v1103 = vld [vmem:[#allocation2 + $0x38] sm:$0xff]
        %v1104 = vld [vmem:[#allocation2 + $0x40] sm:$0xff]
        %v1105 = vld [vmem:[#allocation2 + $0x48] sm:$0xff]
        %v1106 = vld [vmem:[#allocation2 + $0x50] sm:$0xff]
        %v1107 = vld [vmem:[#allocation2 + $0x58] sm:$0xff]
        %v1108 = vld [vmem:[#allocation2 + $0x60] sm:$0xff]
        %v1109 = vld [vmem:[#allocation2 + $0x68] sm:$0xff]
        %v1110 = vld [vmem:[#allocation2 + $0x70] sm:$0xff]
        %v1111 = vld [vmem:[#allocation2 + $0x78] sm:$0xff]
        %1112 = vrot.lane.b32.xlu0 %v623, 96
        %v1113 = vpop.permute.xlu0 %1112
        %1114 = vrot.lane.b32.xlu0 %v626, 96
        %v1115 = vpop.permute.xlu0 %1114
        %1132 = vrot.lane.b32.xlu0 %v1096, 96
        %v1133 = vpop.permute.xlu0 %1132
        %1134 = vrot.lane.b32.xlu0 %v1097, 96
        %v1135 = vpop.permute.xlu0 %1134
        %1136 = vrot.lane.b32.xlu0 %v1098, 96
        %v1137 = vpop.permute.xlu0 %1136
        %1138 = vrot.lane.b32.xlu0 %v1099, 96
        %v1139 = vpop.permute.xlu0 %1138
        %1140 = vrot.lane.b32.xlu0 %v1100, 96
        %v1141 = vpop.permute.xlu0 %1140
        %1142 = vrot.lane.b32.xlu0 %v1101, 96
        %v1143 = vpop.permute.xlu0 %1142
        %1144 = vrot.lane.b32.xlu0 %v1102, 96
        %v1145 = vpop.permute.xlu0 %1144
        %1146 = vrot.lane.b32.xlu0 %v1103, 96
        %v1147 = vpop.permute.xlu0 %1146
        %1148 = vrot.lane.b32.xlu0 %v1104, 96
        %v1149 = vpop.permute.xlu0 %1148
        %1150 = vrot.lane.b32.xlu0 %v1105, 96
        %v1151 = vpop.permute.xlu0 %1150
        %1152 = vrot.lane.b32.xlu0 %v1106, 96
        %v1153 = vpop.permute.xlu0 %1152
        %1154 = vrot.lane.b32.xlu0 %v1107, 96
        %v1155 = vpop.permute.xlu0 %1154
        %1156 = vrot.lane.b32.xlu0 %v1108, 96
        %v1157 = vpop.permute.xlu0 %1156
        %1158 = vrot.lane.b32.xlu0 %v1109, 96
        %v1159 = vpop.permute.xlu0 %1158
        %1160 = vrot.lane.b32.xlu0 %v1110, 96
        %v1161 = vpop.permute.xlu0 %1160
        %1162 = vrot.lane.b32.xlu0 %v1111, 96
        %v1163 = vpop.permute.xlu0 %1162
        %v1164 = vsel %vm648, %v1113, 0
        %v1166 = vsel %vm648, %v1115, 0
        %v1168 = vsel %vm648, %v1133, 0
        %v1170 = vsel %vm648, %v1135, 0
        %v1172 = vsel %vm648, %v1137, 0
        %v1174 = vsel %vm648, %v1139, 0
        %v1176 = vsel %vm648, %v1141, 0
        %v1178 = vsel %vm648, %v1143, 0
        %v1180 = vsel %vm648, %v1145, 0
        %v1182 = vsel %vm648, %v1147, 0
        %v1184 = vsel %vm648, %v1149, 0
        %v1186 = vsel %vm648, %v1151, 0
        %v1188 = vsel %vm648, %v1153, 0
        %v1190 = vsel %vm648, %v1155, 0
        %v1192 = vsel %vm648, %v1157, 0
        %v1194 = vsel %vm648, %v1159, 0
        %v1196 = vsel %vm648, %v1161, 0
        %v1198 = vsel %vm648, %v1163, 0
        %1200 = vmatpush.xpose.msra.mxu0 %v1198
        %1201 = vmatpush.xpose.msra.mxu0 %v1196
        %1202 = vmatpush.xpose.msra.mxu0 %v1194
        %1203 = vmatpush.xpose.msra.mxu0 %v1192
        %1204 = vmatpush.xpose.msra.mxu0 %v1190
        %1205 = vmatpush.xpose.msra.mxu0 %v1188
        %1206 = vmatpush.xpose.msra.mxu0 %v1186
        %1207 = vmatpush.xpose.msra.mxu0 %v1184
        %1208 = vmatpush.xpose.msra.mxu0 %v1182
        %1209 = vmatpush.xpose.msra.mxu0 %v1180
        %1210 = vmatpush.xpose.msra.mxu0 %v1178
        %1211 = vmatpush.xpose.msra.mxu0 %v1176
        %1212 = vmatpush.xpose.msra.mxu0 %v1174
        %1213 = vmatpush.xpose.msra.mxu0 %v1172
        %1214 = vmatpush.xpose.msra.mxu0 %v1170
        %1215 = vmatpush.xpose.msra.mxu0 %v1168
        %1216 = vmatmul.f32.gmra.mxu0 %v1164
        %v1217 = vpop.f32.mrf.mxu0
        %v1218 = vadd.f32 %v646, %v1217
        %1219 = vmatmul.f32.gmra.mxu0 %v1166
        %v1220 = vpop.f32.mrf.mxu0
        %v1221 = vadd.f32 %v646, %v1220
        %1222 = vdwg.mxu0
        %1223 = vmax.xlane.f32.xlu0 %v1218
        %v1224 = vpop.xlane.xlu0 %1223
        %1225 = vmax.xlane.f32.xlu0 %v1221
        %v1226 = vpop.xlane.xlu0 %1225
        %v1227 = vsub.f32 %v1218, %v1224
        %v1228 = vsub.f32 %v1221, %v1226
        %v1229 = vmul.f32 %v1227, 1.442695
        %v1230 = vpow.pop %v1229
        %v1231 = vmul.f32 %v1228, 1.442695
        %v1232 = vpow.pop %v1231
        %1233 = vadd.xlane.f32.xlu0 %v1230
        %v1234 = vpop.xlane.xlu0 %1233
        %1235 = vadd.xlane.f32.xlu0 %v1232
        %v1236 = vpop.xlane.xlu0 %1235
        %v1237 = vrcp.pop %v1234
        %v1238 = vmul.f32 %v1234, %v1237
        %v1239 = vsub.f32 1.0, %v1238
        %v1240 = vmul.f32 %v1237, %v1239
        %v1241 = vadd.f32 %v1237, %v1240
        %vm1242 = vweird.f32 %v1234
        %vm1243 = vweird.f32 %v1237
        %vm1244 = vmor %vm1242, %vm1243
        %v1245 = vsel %vm1244, %v1237, %v1241
        %v1246 = vand.u32 2147483647, %v1234
        %vm1247 = vcmp.eq.f32.partialorder %v1246, 8.507059e+37
        %v1248 = vand.u32 %v1234, 2147483648
        %v1249 = vor.u32 1.1754944e-38, %v1248
        %v1250 = vsel %vm1247, %v1249, %v1245
        %v1251 = vrcp.pop %v1236
        %v1252 = vmul.f32 %v1236, %v1251
        %v1253 = vsub.f32 1.0, %v1252
        %v1254 = vmul.f32 %v1251, %v1253
        %v1255 = vadd.f32 %v1251, %v1254
        %vm1256 = vweird.f32 %v1236
        %vm1257 = vweird.f32 %v1251
        %vm1258 = vmor %vm1256, %vm1257
        %v1259 = vsel %vm1258, %v1251, %v1255
        %v1260 = vand.u32 2147483647, %v1236
        %vm1261 = vcmp.eq.f32.partialorder %v1260, 8.507059e+37
        %v1262 = vand.u32 %v1236, 2147483648
        %v1263 = vor.u32 1.1754944e-38, %v1262
        %v1264 = vsel %vm1261, %v1263, %v1259
        %1265 = vrot.lane.b32.xlu0 %v1096, 32
        %v1266 = vpop.permute.xlu0 %1265
        %1267 = vrot.lane.b32.xlu0 %v1097, 32
        %v1268 = vpop.permute.xlu0 %1267
        %1269 = vrot.lane.b32.xlu0 %v1098, 32
        %v1270 = vpop.permute.xlu0 %1269
        %1271 = vrot.lane.b32.xlu0 %v1099, 32
        %v1272 = vpop.permute.xlu0 %1271
        %1273 = vrot.lane.b32.xlu0 %v1100, 32
        %v1274 = vpop.permute.xlu0 %1273
        %1275 = vrot.lane.b32.xlu0 %v1101, 32
        %v1276 = vpop.permute.xlu0 %1275
        %1277 = vrot.lane.b32.xlu0 %v1102, 32
        %v1278 = vpop.permute.xlu0 %1277
        %1279 = vrot.lane.b32.xlu0 %v1103, 32
        %v1280 = vpop.permute.xlu0 %1279
        %1281 = vrot.lane.b32.xlu0 %v1104, 32
        %v1282 = vpop.permute.xlu0 %1281
        %1283 = vrot.lane.b32.xlu0 %v1105, 32
        %v1284 = vpop.permute.xlu0 %1283
        %1285 = vrot.lane.b32.xlu0 %v1106, 32
        %v1286 = vpop.permute.xlu0 %1285
        %1287 = vrot.lane.b32.xlu0 %v1107, 32
        %v1288 = vpop.permute.xlu0 %1287
        %1289 = vrot.lane.b32.xlu0 %v1108, 32
        %v1290 = vpop.permute.xlu0 %1289
        %1291 = vrot.lane.b32.xlu0 %v1109, 32
        %v1292 = vpop.permute.xlu0 %1291
        %1293 = vrot.lane.b32.xlu0 %v1110, 32
        %v1294 = vpop.permute.xlu0 %1293
        %1295 = vrot.lane.b32.xlu0 %v1111, 32
        %v1296 = vpop.permute.xlu0 %1295
        %1313 = vmatpush.msra.mxu0 %v1296
        %1314 = vmatpush.msra.mxu0 %v1294
        %1315 = vmatpush.msra.mxu0 %v1292
        %1316 = vmatpush.msra.mxu0 %v1290
        %1317 = vmatpush.msra.mxu0 %v1288
        %1318 = vmatpush.msra.mxu0 %v1286
        %1319 = vmatpush.msra.mxu0 %v1284
        %1320 = vmatpush.msra.mxu0 %v1282
        %1321 = vmatpush.msra.mxu0 %v1280
        %1322 = vmatpush.msra.mxu0 %v1278
        %1323 = vmatpush.msra.mxu0 %v1276
        %1324 = vmatpush.msra.mxu0 %v1274
        %1325 = vmatpush.msra.mxu0 %v1272
        %1326 = vmatpush.msra.mxu0 %v1270
        %1327 = vmatpush.msra.mxu0 %v1268
        %1328 = vmatpush.msra.mxu0 %v1266
        %1329 = vmatmul.f32.gmra.mxu0 %v1230
        %v1330 = vpop.f32.mrf.mxu0
        %v1331 = vadd.f32 0.0, %v1330
        %1332 = vmatmul.f32.gmra.mxu0 %v1232
        %v1333 = vpop.f32.mrf.mxu0
        %v1334 = vadd.f32 0.0, %v1333
        %1335 = vdwg.mxu0
        %v1336 = vmul.f32 %v1331, %v1250
        %v1337 = vmul.f32 %v1334, %v1264
        %1340 = vrot.lane.b32.xlu0 %v1336, 32
        %v1341 = vpop.permute.xlu0 %1340
        %1342 = vrot.lane.b32.xlu0 %v1337, 32
        %v1343 = vpop.permute.xlu0 %1342
        %vm1346 = vcmask 392448
        %1347 = vst.msk [vmem:[#allocation3] sm:$0xff] %vm1346, %v1341
        %1348 = vst.msk [vmem:[#allocation3 + $0x8] sm:$0xff] %vm1346, %v1343
        %v1349 = vld [vmem:[#allocation2] sm:$0xff]
        %v1350 = vld [vmem:[#allocation2 + $0x8] sm:$0xff]
        %v1351 = vld [vmem:[#allocation2 + $0x10] sm:$0xff]
        %v1352 = vld [vmem:[#allocation2 + $0x18] sm:$0xff]
        %v1353 = vld [vmem:[#allocation2 + $0x20] sm:$0xff]
        %v1354 = vld [vmem:[#allocation2 + $0x28] sm:$0xff]
        %v1355 = vld [vmem:[#allocation2 + $0x30] sm:$0xff]
        %v1356 = vld [vmem:[#allocation2 + $0x38] sm:$0xff]
        %v1357 = vld [vmem:[#allocation2 + $0x40] sm:$0xff]
        %v1358 = vld [vmem:[#allocation2 + $0x48] sm:$0xff]
        %v1359 = vld [vmem:[#allocation2 + $0x50] sm:$0xff]
        %v1360 = vld [vmem:[#allocation2 + $0x58] sm:$0xff]
        %v1361 = vld [vmem:[#allocation2 + $0x60] sm:$0xff]
        %v1362 = vld [vmem:[#allocation2 + $0x68] sm:$0xff]
        %v1363 = vld [vmem:[#allocation2 + $0x70] sm:$0xff]
        %v1364 = vld [vmem:[#allocation2 + $0x78] sm:$0xff]
        %1365 = vrot.lane.b32.xlu0 %v623, 80
        %v1366 = vpop.permute.xlu0 %1365
        %1367 = vrot.lane.b32.xlu0 %v626, 80
        %v1368 = vpop.permute.xlu0 %1367
        %1385 = vrot.lane.b32.xlu0 %v1349, 80
        %v1386 = vpop.permute.xlu0 %1385
        %1387 = vrot.lane.b32.xlu0 %v1350, 80
        %v1388 = vpop.permute.xlu0 %1387
        %1389 = vrot.lane.b32.xlu0 %v1351, 80
        %v1390 = vpop.permute.xlu0 %1389
        %1391 = vrot.lane.b32.xlu0 %v1352, 80
        %v1392 = vpop.permute.xlu0 %1391
        %1393 = vrot.lane.b32.xlu0 %v1353, 80
        %v1394 = vpop.permute.xlu0 %1393
        %1395 = vrot.lane.b32.xlu0 %v1354, 80
        %v1396 = vpop.permute.xlu0 %1395
        %1397 = vrot.lane.b32.xlu0 %v1355, 80
        %v1398 = vpop.permute.xlu0 %1397
        %1399 = vrot.lane.b32.xlu0 %v1356, 80
        %v1400 = vpop.permute.xlu0 %1399
        %1401 = vrot.lane.b32.xlu0 %v1357, 80
        %v1402 = vpop.permute.xlu0 %1401
        %1403 = vrot.lane.b32.xlu0 %v1358, 80
        %v1404 = vpop.permute.xlu0 %1403
        %1405 = vrot.lane.b32.xlu0 %v1359, 80
        %v1406 = vpop.permute.xlu0 %1405
        %1407 = vrot.lane.b32.xlu0 %v1360, 80
        %v1408 = vpop.permute.xlu0 %1407
        %1409 = vrot.lane.b32.xlu0 %v1361, 80
        %v1410 = vpop.permute.xlu0 %1409
        %1411 = vrot.lane.b32.xlu0 %v1362, 80
        %v1412 = vpop.permute.xlu0 %1411
        %1413 = vrot.lane.b32.xlu0 %v1363, 80
        %v1414 = vpop.permute.xlu0 %1413
        %1415 = vrot.lane.b32.xlu0 %v1364, 80
        %v1416 = vpop.permute.xlu0 %1415
        %v1417 = vsel %vm648, %v1366, 0
        %v1419 = vsel %vm648, %v1368, 0
        %v1421 = vsel %vm648, %v1386, 0
        %v1423 = vsel %vm648, %v1388, 0
        %v1425 = vsel %vm648, %v1390, 0
        %v1427 = vsel %vm648, %v1392, 0
        %v1429 = vsel %vm648, %v1394, 0
        %v1431 = vsel %vm648, %v1396, 0
        %v1433 = vsel %vm648, %v1398, 0
        %v1435 = vsel %vm648, %v1400, 0
        %v1437 = vsel %vm648, %v1402, 0
        %v1439 = vsel %vm648, %v1404, 0
        %v1441 = vsel %vm648, %v1406, 0
        %v1443 = vsel %vm648, %v1408, 0
        %v1445 = vsel %vm648, %v1410, 0
        %v1447 = vsel %vm648, %v1412, 0
        %v1449 = vsel %vm648, %v1414, 0
        %v1451 = vsel %vm648, %v1416, 0
        %1453 = vmatpush.xpose.msra.mxu0 %v1451
        %1454 = vmatpush.xpose.msra.mxu0 %v1449
        %1455 = vmatpush.xpose.msra.mxu0 %v1447
        %1456 = vmatpush.xpose.msra.mxu0 %v1445
        %1457 = vmatpush.xpose.msra.mxu0 %v1443
        %1458 = vmatpush.xpose.msra.mxu0 %v1441
        %1459 = vmatpush.xpose.msra.mxu0 %v1439
        %1460 = vmatpush.xpose.msra.mxu0 %v1437
        %1461 = vmatpush.xpose.msra.mxu0 %v1435
        %1462 = vmatpush.xpose.msra.mxu0 %v1433
        %1463 = vmatpush.xpose.msra.mxu0 %v1431
        %1464 = vmatpush.xpose.msra.mxu0 %v1429
        %1465 = vmatpush.xpose.msra.mxu0 %v1427
        %1466 = vmatpush.xpose.msra.mxu0 %v1425
        %1467 = vmatpush.xpose.msra.mxu0 %v1423
        %1468 = vmatpush.xpose.msra.mxu0 %v1421
        %1469 = vmatmul.f32.gmra.mxu0 %v1417
        %v1470 = vpop.f32.mrf.mxu0
        %v1471 = vadd.f32 %v646, %v1470
        %1472 = vmatmul.f32.gmra.mxu0 %v1419
        %v1473 = vpop.f32.mrf.mxu0
        %v1474 = vadd.f32 %v646, %v1473
        %1475 = vdwg.mxu0
        %1476 = vmax.xlane.f32.xlu0 %v1471
        %v1477 = vpop.xlane.xlu0 %1476
        %1478 = vmax.xlane.f32.xlu0 %v1474
        %v1479 = vpop.xlane.xlu0 %1478
        %v1480 = vsub.f32 %v1471, %v1477
        %v1481 = vsub.f32 %v1474, %v1479
        %v1482 = vmul.f32 %v1480, 1.442695
        %v1483 = vpow.pop %v1482
        %v1484 = vmul.f32 %v1481, 1.442695
        %v1485 = vpow.pop %v1484
        %1486 = vadd.xlane.f32.xlu0 %v1483
        %v1487 = vpop.xlane.xlu0 %1486
        %1488 = vadd.xlane.f32.xlu0 %v1485
        %v1489 = vpop.xlane.xlu0 %1488
        %v1490 = vrcp.pop %v1487
        %v1491 = vmul.f32 %v1487, %v1490
        %v1492 = vsub.f32 1.0, %v1491
        %v1493 = vmul.f32 %v1490, %v1492
        %v1494 = vadd.f32 %v1490, %v1493
        %vm1495 = vweird.f32 %v1487
        %vm1496 = vweird.f32 %v1490
        %vm1497 = vmor %vm1495, %vm1496
        %v1498 = vsel %vm1497, %v1490, %v1494
        %v1499 = vand.u32 2147483647, %v1487
        %vm1500 = vcmp.eq.f32.partialorder %v1499, 8.507059e+37
        %v1501 = vand.u32 %v1487, 2147483648
        %v1502 = vor.u32 1.1754944e-38, %v1501
        %v1503 = vsel %vm1500, %v1502, %v1498
        %v1504 = vrcp.pop %v1489
        %v1505 = vmul.f32 %v1489, %v1504
        %v1506 = vsub.f32 1.0, %v1505
        %v1507 = vmul.f32 %v1504, %v1506
        %v1508 = vadd.f32 %v1504, %v1507
        %vm1509 = vweird.f32 %v1489
        %vm1510 = vweird.f32 %v1504
        %vm1511 = vmor %vm1509, %vm1510
        %v1512 = vsel %vm1511, %v1504, %v1508
        %v1513 = vand.u32 2147483647, %v1489
        %vm1514 = vcmp.eq.f32.partialorder %v1513, 8.507059e+37
        %v1515 = vand.u32 %v1489, 2147483648
        %v1516 = vor.u32 1.1754944e-38, %v1515
        %v1517 = vsel %vm1514, %v1516, %v1512
        %1518 = vrot.lane.b32.xlu0 %v1349, 16
        %v1519 = vpop.permute.xlu0 %1518
        %1520 = vrot.lane.b32.xlu0 %v1350, 16
        %v1521 = vpop.permute.xlu0 %1520
        %1522 = vrot.lane.b32.xlu0 %v1351, 16
        %v1523 = vpop.permute.xlu0 %1522
        %1524 = vrot.lane.b32.xlu0 %v1352, 16
        %v1525 = vpop.permute.xlu0 %1524
        %1526 = vrot.lane.b32.xlu0 %v1353, 16
        %v1527 = vpop.permute.xlu0 %1526
        %1528 = vrot.lane.b32.xlu0 %v1354, 16
        %v1529 = vpop.permute.xlu0 %1528
        %1530 = vrot.lane.b32.xlu0 %v1355, 16
        %v1531 = vpop.permute.xlu0 %1530
        %1532 = vrot.lane.b32.xlu0 %v1356, 16
        %v1533 = vpop.permute.xlu0 %1532
        %1534 = vrot.lane.b32.xlu0 %v1357, 16
        %v1535 = vpop.permute.xlu0 %1534
        %1536 = vrot.lane.b32.xlu0 %v1358, 16
        %v1537 = vpop.permute.xlu0 %1536
        %1538 = vrot.lane.b32.xlu0 %v1359, 16
        %v1539 = vpop.permute.xlu0 %1538
        %1540 = vrot.lane.b32.xlu0 %v1360, 16
        %v1541 = vpop.permute.xlu0 %1540
        %1542 = vrot.lane.b32.xlu0 %v1361, 16
        %v1543 = vpop.permute.xlu0 %1542
        %1544 = vrot.lane.b32.xlu0 %v1362, 16
        %v1545 = vpop.permute.xlu0 %1544
        %1546 = vrot.lane.b32.xlu0 %v1363, 16
        %v1547 = vpop.permute.xlu0 %1546
        %1548 = vrot.lane.b32.xlu0 %v1364, 16
        %v1549 = vpop.permute.xlu0 %1548
        %1566 = vmatpush.msra.mxu0 %v1549
        %1567 = vmatpush.msra.mxu0 %v1547
        %1568 = vmatpush.msra.mxu0 %v1545
        %1569 = vmatpush.msra.mxu0 %v1543
        %1570 = vmatpush.msra.mxu0 %v1541
        %1571 = vmatpush.msra.mxu0 %v1539
        %1572 = vmatpush.msra.mxu0 %v1537
        %1573 = vmatpush.msra.mxu0 %v1535
        %1574 = vmatpush.msra.mxu0 %v1533
        %1575 = vmatpush.msra.mxu0 %v1531
        %1576 = vmatpush.msra.mxu0 %v1529
        %1577 = vmatpush.msra.mxu0 %v1527
        %1578 = vmatpush.msra.mxu0 %v1525
        %1579 = vmatpush.msra.mxu0 %v1523
        %1580 = vmatpush.msra.mxu0 %v1521
        %1581 = vmatpush.msra.mxu0 %v1519
        %1582 = vmatmul.f32.gmra.mxu0 %v1483
        %v1583 = vpop.f32.mrf.mxu0
        %v1584 = vadd.f32 0.0, %v1583
        %1585 = vmatmul.f32.gmra.mxu0 %v1485
        %v1586 = vpop.f32.mrf.mxu0
        %v1587 = vadd.f32 0.0, %v1586
        %1588 = vdwg.mxu0
        %v1589 = vmul.f32 %v1584, %v1503
        %v1590 = vmul.f32 %v1587, %v1517
        %1593 = vrot.lane.b32.xlu0 %v1589, 48
        %v1594 = vpop.permute.xlu0 %1593
        %1595 = vrot.lane.b32.xlu0 %v1590, 48
        %v1596 = vpop.permute.xlu0 %1595
        %vm1599 = vcmask 523648
        %1600 = vst.msk [vmem:[#allocation3] sm:$0xff] %vm1599, %v1594
        %1601 = vst.msk [vmem:[#allocation3 + $0x8] sm:$0xff] %vm1599, %v1596
        %v1602 = vld [vmem:[#allocation3] sm:$0xff]
        %v1603 = vld [vmem:[#allocation3 + $0x8] sm:$0xff]
        %v1604 = vld [vmem:[%s6] sm:$0xff]
        %v1605 = vld [vmem:[%s6 + $0x8] sm:$0xff]
        %v1606 = vld [vmem:[%s6 + $0x10] sm:$0xff]
        %v1607 = vld [vmem:[%s6 + $0x18] sm:$0xff]
        %v1608 = vld [vmem:[%s6 + $0x20] sm:$0xff]
        %v1609 = vld [vmem:[%s6 + $0x28] sm:$0xff]
        %v1610 = vld [vmem:[%s6 + $0x30] sm:$0xff]
        %v1611 = vld [vmem:[%s6 + $0x38] sm:$0xff]
        %vm1612 = vcmask 523264
        %v1614 = vsel %vm1612, %v1602, 0
        %v1617 = vsel %vm1612, %v1603, 0
        %1619 = vmatpush.msra.mxu0 0.0
        %1620 = vmatpush.msra.mxu0 0.0
        %1621 = vmatpush.msra.mxu0 0.0
        %1622 = vmatpush.msra.mxu0 0.0
        %1623 = vmatpush.msra.mxu0 0.0
        %1624 = vmatpush.msra.mxu0 0.0
        %1625 = vmatpush.msra.mxu0 0.0
        %1626 = vmatpush.msra.mxu0 0.0
        %1627 = vmatpush.msra.mxu0 %v1611
        %1628 = vmatpush.msra.mxu0 %v1610
        %1629 = vmatpush.msra.mxu0 %v1609
        %1630 = vmatpush.msra.mxu0 %v1608
        %1631 = vmatpush.msra.mxu0 %v1607
        %1632 = vmatpush.msra.mxu0 %v1606
        %1633 = vmatpush.msra.mxu0 %v1605
        %1634 = vmatpush.msra.mxu0 %v1604
        %1635 = vmatmul.f32.gmra.mxu0 %v1614
        %v1636 = vpop.f32.mrf.mxu0
        %v1637 = vadd.f32 0.0, %v1636
        %1638 = vmatmul.f32.gmra.mxu0 %v1617
        %v1639 = vpop.f32.mrf.mxu0
        %v1640 = vadd.f32 0.0, %v1639
        %1641 = vdwg.mxu0
        %1642 = vadd.xlane.f32.xlu0 %v1637
        %v1643 = vpop.xlane.xlu0 %1642
        %1644 = vadd.xlane.f32.xlu0 %v1640
        %v1645 = vpop.xlane.xlu0 %1644
        %v1646 = vmul.f32 %v1643, 0.03125
        %v1647 = vmul.f32 %v1645, 0.03125
        %v1648 = vsub.f32 %v1637, %v1646
        %v1649 = vsub.f32 %v1640, %v1647
        %v1650 = vmul.f32 %v1648, %v540
        %v1651 = vmul.f32 %v1649, %v540
        %v1652 = vmul.f32 %v1650, %v1650
        %v1653 = vmul.f32 %v1651, %v1651
        %1654 = vadd.xlane.f32.xlu0 %v1652
        %v1655 = vpop.xlane.xlu0 %1654
        %1656 = vadd.xlane.f32.xlu0 %v1653
        %v1657 = vpop.xlane.xlu0 %1656
        %v1658 = vmul.f32 %v1655, 0.03125
        %v1659 = vmul.f32 %v1657, 0.03125
        %v1660 = vadd.f32 %v1658, 1e-05
        %v1661 = vadd.f32 %v1659, 1e-05
        %v1662 = vrsqrt.pop %v1660
        %v1663 = vmul.f32 %v1662, %v1660
        %v1664 = vmul.f32 %v1663, %v1662
        %v1665 = vmul.f32 0.5, %v1664
        %v1666 = vsub.f32 1.5, %v1665
        %v1667 = vmul.f32 %v1662, %v1666
        %vm1668 = vweird.f32 %v1660
        %vm1669 = vweird.f32 %v1662
        %vm1670 = vmor %vm1668, %vm1669
        %v1671 = vsel %vm1670, %v1662, %v1667
        %v1672 = vrsqrt.pop %v1661
        %v1673 = vmul.f32 %v1672, %v1661
        %v1674 = vmul.f32 %v1673, %v1672
        %v1675 = vmul.f32 0.5, %v1674
        %v1676 = vsub.f32 1.5, %v1675
        %v1677 = vmul.f32 %v1672, %v1676
        %vm1678 = vweird.f32 %v1661
        %vm1679 = vweird.f32 %v1672
        %vm1680 = vmor %vm1678, %vm1679
        %v1681 = vsel %vm1680, %v1672, %v1677
        %v1682 = vmul.f32 %v1650, %v1671
        %v1683 = vmul.f32 %v1651, %v1681
        %v1684 = vld [vmem:[%s8] sm:$0x1]
        %v1686 = vperm.slane %v1684, 0
        %v1688 = vmul.f32 %v1682, %v1686
        %v1689 = vmul.f32 %v1683, %v1686
        %1690 = vst [vmem:[%s412] sm:$0xff] %v1688
        %1691 = vst [vmem:[%s412 + $0x8] sm:$0xff] %v1689
        %s1692 = sand.u32 %s252, 1
        %s1693 = scalar_lea.sflag [#allocation6], %s1692
        %s1694 = sand.u32 %s252, 1
        %s1695 = smul.addr %s1694, 16
        %s1696 = scalar_lea.vmem [#allocation9], %s1695
        // Predicated region
        $region69: #{tpu_custom_call.1} parent=55 // pred_check
          %p1697 = pneg %p262
        $region70: #{tpu_custom_call.1} parent=55 // pred_check_branch
          %1699 = sbr.rel (%p1697) target = $region72
        $region71: #{tpu_custom_call.1} parent=55 // pred_region
          %s1700 = smul.u32 2, %s34
          %1702 = vsyncadd %s1693, 0
          %s1703 = smul.addr %s33, 2
          %s1704 = sadd.s32 %s1700, %s1703
          %s1705 = smul.addr %s1704, 8
          %s1706 = scalar_lea.hbm %s9, %s1705
          %s1707 = sshll.u32 %s1696, 4
          %s1708 = int_to_ptr.vmem [resolvable:$true] %s1707
          %s1709 = sshll.u32 %s1706, 4
          %s1710 = int_to_ptr.hbm [resolvable:$true] %s1709
          %1715 = dma.vmem_to_hbm [thread:$0]  %s1708, 256, %s1710, %s1693, 128, 128, 8
        $region72: #{tpu_custom_call.1} parent=55 // pred_fallthru
          _
      $region56: #{tpu_custom_call.1} parent=5 // pred_fallthru
        _
      %p1716 = scmp.le.s32.totalorder 2, %s24
      // Predicated region
      $region73: #{tpu_custom_call.1} parent=5 // pred_check
        %p1717 = pneg %p1716
      $region74: #{tpu_custom_call.1} parent=5 // pred_check_branch
        %1719 = sbr.rel (%p1717) target = $region76
      $region75: #{tpu_custom_call.1} parent=5 // pred_region
        %s1720 = ssub.s32 %s24, 2
        // Predicated region
        $region77: #{tpu_custom_call.1} parent=75 // pred_check
          %p1721 = pneg %p268
        $region78: #{tpu_custom_call.1} parent=75 // pred_check_branch
          %1723 = sbr.rel (%p1721) target = $region80
        $region79: #{tpu_custom_call.1} parent=75 // pred_region
          %s1724 = sand.u32 %s253, 1
          %s1725 = scalar_lea.sflag [#allocation6], %s1724
          %s1726 = sand.u32 %s253, 1
          %s1727 = smul.addr %s1726, 16
          %s1728 = scalar_lea.vmem [#allocation9], %s1727
          %1730 = dma.done %s1725, 256
        $region80: #{tpu_custom_call.1} parent=75 // pred_fallthru
          _
      $region76: #{tpu_custom_call.1} parent=5 // pred_fallthru
        _
    $region6: #{tpu_custom_call.1} parent=1 // loop_footer
      %s28 = sadd.s32 1, %s24
    $region7: #{tpu_custom_call.1} parent=1 // loop_footer_branch
      %23 = sbr.rel target = $region3
    $region8: #{tpu_custom_call.1} parent=1 // loop_exit
      _
    %1731 = vsyncpa [#allocation5], 1
    %s1732 = scalar_lea.sflag [#allocation5], 1
    %1733 = vsyncpa %s1732, 1
    %1734 = vsyncpa [#allocation8], 1
    %s1735 = scalar_lea.sflag [#allocation8], 1
    %1736 = vsyncpa %s1735, 1
    %1737 = vsyncpa [#allocation6], 1
    %s1738 = scalar_lea.sflag [#allocation6], 1
    %1739 = vsyncpa %s1738, 1

</llo_original>
